<compile_context>
chip_gen: v7x
topology: tpu7x:2x2x1
jax: 0.10.0
libtpu: 0.0.40
codegen_flags: <defaults>
</compile_context>

<pallas_src>
import jax
import jax.numpy as jnp
from jax import lax
from jax.experimental import pallas as pl
from jax.experimental.pallas import tpu as pltpu

LANE = 128
K3_PAD = 8        # the "3 neighbours" axis padded to a full sublane group


def _rup(x, m):
    return ((x + m - 1) // m) * m


# ----------------------------------------------------------------------------
# Plain-JAX glue (tiny [B, 3, N] arrays only)
# ----------------------------------------------------------------------------
def square_distance(src, dst):
    # src: [B, N, C], dst: [B, M, C] -> [B, N, M]
    dist = -2.0 * jnp.einsum("bnc,bmc->bnm", src, dst)
    dist += jnp.sum(src ** 2, axis=-1)[:, :, None]
    dist += jnp.sum(dst ** 2, axis=-1)[:, None, :]
    return dist


def index_points(points, idx):
    # points: [B, M, C], idx: [B, ...] -> [B, ..., C]
    return jax.vmap(lambda p, i: p[i])(points, idx)


def _three_nn_weights(xyz1, xyz2):
    """xyz1 [B,C,N], xyz2 [B,C,S] -> idx [B,3,N] int32, w [B,3,N] f32."""
    B, _, N = xyz1.shape
    S = xyz2.shape[2]
    if S == 1:
        idx = jnp.zeros((B, 3, N), jnp.int32)
        w = jnp.concatenate([jnp.ones((B, 1, N), jnp.float32),
                             jnp.zeros((B, 2, N), jnp.float32)], axis=1)
        return idx, w
    xyz1_t = jnp.transpose(xyz1, (0, 2, 1))                 # [B, N, C]
    xyz2_t = jnp.transpose(xyz2, (0, 2, 1))                 # [B, S, C]
    dists = square_distance(xyz1_t, xyz2_t)                 # [B, N, S]
    neg_d, idx = lax.top_k(-dists, 3)                       # 3 nearest
    d = jnp.maximum(-neg_d, 1e-10)                          # matches torch clamp
    w = 1.0 / d
    w = w / jnp.sum(w, axis=-1, keepdims=True)              # [B, N, 3]
    return (jnp.transpose(idx, (0, 2, 1)).astype(jnp.int32),
            jnp.transpose(w, (0, 2, 1)).astype(jnp.float32))


# ----------------------------------------------------------------------------
# Pallas kernel: interpolation + (1x1 conv -> BN(eval, folded) -> ReLU)*L,
# channel-first on [C_pad, TS] tiles.
# ----------------------------------------------------------------------------
def _make_fp_kernel(n_layers, has_pts1, s_pad, compute_dtype):
    def kernel(*refs):
        out_ref = refs[-1]
        pos = 0
        if has_pts1:
            pts1_ref = refs[pos]; pos += 1                  # (1, D1_pad, TS)
        idx_ref = refs[pos]                                 # (1, 8, TS) int32
        w_ref = refs[pos + 1]                               # (1, 8, TS) f32
        p2p_ref = refs[pos + 2]                             # (1, C1_pad, S_pad)
        pos += 3
        ts = idx_ref.shape[-1]

        # Sparse->dense interpolation matrix (S_pad, TS): 3 one-hot scatters
        # built with VPU compares against an iota -- no dynamic gather.
        idx_t = idx_ref[0]                                  # (8, TS)
        w_t = w_ref[0]                                      # (8, TS)
        iota_s = lax.broadcasted_iota(jnp.int32, (s_pad, ts), 0)
        wmat = jnp.where(iota_s == idx_t[0:1, :], w_t[0:1, :], 0.0)
        for k in (1, 2):
            wmat = wmat + jnp.where(iota_s == idx_t[k:k + 1, :],
                                    w_t[k:k + 1, :], 0.0)

        # Layer 0: interpolated branch (W0b already folded into p2p) + skip.
        acc = jnp.dot(p2p_ref[0], wmat.astype(compute_dtype),
                      preferred_element_type=jnp.float32)   # (C1_pad, TS)
        if has_pts1:
            w0a = refs[pos][...]; pos += 1                  # (C1_pad, D1_pad)
            acc = acc + jnp.dot(w0a, pts1_ref[0],
                                preferred_element_type=jnp.float32)
        shift0 = refs[pos][...]; pos += 1                   # (C1_pad, 1) f32
        h = jnp.maximum(acc + shift0, 0.0)

        # Remaining layers.
        for _ in range(1, n_layers):
            w_l = refs[pos][...]                            # (Cl_pad, Cl-1_pad)
            s_l = refs[pos + 1][...]                        # (Cl_pad, 1) f32
            pos += 2
            acc = jnp.dot(w_l, h.astype(compute_dtype),
                          preferred_element_type=jnp.float32)
            h = jnp.maximum(acc + s_l, 0.0)

        out_ref[0] = h.astype(out_ref.dtype)                # (CL_pad, TS)
    return kernel


# ----------------------------------------------------------------------------
# Module-equivalent forward
# ----------------------------------------------------------------------------
def pointnet_feature_propagation_forward(xyz1, xyz2, points1, points2, params,
                                         *, tile_rows=1024,
                                         compute_dtype=jnp.bfloat16,
                                         out_dtype=None):
    """
    xyz1: [B, C, N], xyz2: [B, C, S], points1: [B, D1, N] or None,
    points2: [B, D2, S]  ->  new_points [B, Cout, N]  (channel-first).
    """
    if out_dtype is None:
        out_dtype = (jnp.float32
                     if jnp.dtype(compute_dtype) == jnp.dtype(jnp.float32)
                     else jnp.bfloat16)
    B, _, N = xyz1.shape
    S = xyz2.shape[2]
    has_pts1 = points1 is not None
    D1 = points1.shape[1] if has_pts1 else 0

    wT = params["wT"]            # list of (Cin_i, Cout_i), BN scale folded
    shifts = params["shift"]     # list of (1, Cout_i)
    n_layers = len(wT)
    couts = [w_.shape[1] for w_ in wT]
    c_pads = [_rup(c, LANE) for c in couts]
    cl_pad = c_pads[-1]

    # --- 3-NN indices / inverse-distance weights (tiny) ---
    idx, w = _three_nn_weights(xyz1, xyz2)                  # [B, 3, N]

    # --- tile / pad sizes (all channel axes lane-dense, rows padded to TS) ---
    ts = max(LANE, min(_rup(tile_rows, LANE), _rup(N, LANE)))
    n_tiles = pl.cdiv(N, ts)
    n_pad = n_tiles * ts
    d1_pad = _rup(max(D1, 1), LANE) if has_pts1 else 0
    s_pad = _rup(S, LANE)
    cd_size = jnp.dtype(compute_dtype).itemsize
    out_size = jnp.dtype(out_dtype).itemsize

    # --- streamed operands (channel-first, padded, narrow dtype) ---
    inputs, in_specs = [], []
    if has_pts1:
        pts1_cf = jnp.pad(points1, ((0, 0), (0, d1_pad - D1),
                                    (0, n_pad - N))).astype(compute_dtype)
        inputs.append(pts1_cf)
        in_specs.append(pl.BlockSpec((1, d1_pad, ts), lambda b, i: (b, 0, i)))
    idx_cf = jnp.pad(idx, ((0, 0), (0, K3_PAD - 3), (0, n_pad - N)))
    w_cf = jnp.pad(w, ((0, 0), (0, K3_PAD - 3), (0, n_pad - N)))
    inputs += [idx_cf, w_cf]
    in_specs += [pl.BlockSpec((1, K3_PAD, ts), lambda b, i: (b, 0, i)),
                 pl.BlockSpec((1, K3_PAD, ts), lambda b, i: (b, 0, i))]

    # Layer 0 split by input channel: [0,D1) -> skip branch (W0a),
    # [D1,D1+D2) -> interpolated branch, pre-projected once per sparse set.
    w0 = wT[0]                                              # (D1+D2, C1)
    w0b = w0[D1:, :]                                        # (D2, C1)
    p2p = jnp.einsum("dc,bds->bcs", w0b, points2.astype(jnp.float32))
    p2p = jnp.pad(p2p, ((0, 0), (0, c_pads[0] - couts[0]),
                        (0, s_pad - S))).astype(compute_dtype)
    inputs.append(p2p)
    in_specs.append(pl.BlockSpec((1, c_pads[0], s_pad), lambda b, i: (b, 0, 0)))

    # --- resident (folded, padded) parameters ---
    if has_pts1:
        w0a = jnp.pad(jnp.transpose(w0[:D1, :]),
                      ((0, c_pads[0] - couts[0]), (0, d1_pad - D1)))
        inputs.append(w0a.astype(compute_dtype))
        in_specs.append(pl.BlockSpec(w0a.shape, lambda b, i: (0, 0)))
    sh0 = jnp.pad(jnp.transpose(shifts[0]),
                  ((0, c_pads[0] - couts[0]), (0, 0)))
    inputs.append(sh0.astype(jnp.float32))
    in_specs.append(pl.BlockSpec(sh0.shape, lambda b, i: (0, 0)))
    for l in range(1, n_layers):
        w_l = jnp.pad(jnp.transpose(wT[l]),
                      ((0, c_pads[l] - couts[l]),
                       (0, c_pads[l - 1] - couts[l - 1])))
        s_l = jnp.pad(jnp.transpose(shifts[l]),
                      ((0, c_pads[l] - couts[l]), (0, 0)))
        inputs.append(w_l.astype(compute_dtype))
        in_specs.append(pl.BlockSpec(w_l.shape, lambda b, i: (0, 0)))
        inputs.append(s_l.astype(jnp.float32))
        in_specs.append(pl.BlockSpec(s_l.shape, lambda b, i: (0, 0)))

    # --- cost estimate & explicit VMEM budget ---
    n_stream = (1 if has_pts1 else 0) + 2
    resident_bytes = sum(int(a.size) * a.dtype.itemsize for a in inputs[n_stream:])
    flops_per_col = 2 * c_pads[0] * s_pad
    if has_pts1:
        flops_per_col += 2 * c_pads[0] * d1_pad
    for l in range(1, n_layers):
        flops_per_col += 2 * c_pads[l] * c_pads[l - 1]
    bytes_in = B * n_pad * ((d1_pad * cd_size if has_pts1 else 0)
                            + 2 * K3_PAD * 4) + resident_bytes
    bytes_out = B * n_pad * cl_pad * out_size
    cost = pl.CostEstimate(flops=int(B * n_pad * flops_per_col),
                           transcendentals=0,
                           bytes_accessed=int(bytes_in + bytes_out))

    block_in = (d1_pad * ts * cd_size if has_pts1 else 0) + 2 * K3_PAD * ts * 4
    block_out = cl_pad * ts * out_size
    p2p_block = c_pads[0] * s_pad * cd_size
    cmax = max(c_pads + [s_pad] + ([d1_pad] if has_pts1 else []))
    scratch = 4 * cmax * ts * 4                             # f32 intermediates
    need = 2 * (block_in + block_out + p2p_block) + 2 * resident_bytes + scratch
    # NOTE: cap tile_rows around 1024 on v7x (64 MiB physical VMEM).
    vmem_limit = int(min(max(32 * 1024 * 1024, 2 * need), 96 * 1024 * 1024))

    out = pl.pallas_call(
        _make_fp_kernel(n_layers, has_pts1, s_pad, compute_dtype),
        out_shape=jax.ShapeDtypeStruct((B, cl_pad, n_pad), out_dtype),
        grid=(B, n_tiles),
        in_specs=in_specs,
        out_specs=pl.BlockSpec((1, cl_pad, ts), lambda b, i: (b, 0, i)),
        compiler_params=pltpu.CompilerParams(
            dimension_semantics=("parallel", "parallel"),
            vmem_limit_bytes=vmem_limit),
        cost_estimate=cost,
    )(*inputs)

    cout = couts[-1]
    if cl_pad == cout and n_pad == N:
        return out
    return out[:, :cout, :N]


# ----------------------------------------------------------------------------
# Pure-JAX reference (same fused-affine BN-eval semantics)
# ----------------------------------------------------------------------------
def reference_forward(xyz1, xyz2, points1, points2, params):
    xyz1_t = jnp.transpose(xyz1, (0, 2, 1))
    xyz2_t = jnp.transpose(xyz2, (0, 2, 1))
    pts2_t = jnp.transpose(points2, (0, 2, 1))
    B, N, _ = xyz1_t.shape
    S = xyz2_t.shape[1]
    if S == 1:
        interpolated = jnp.broadcast_to(pts2_t, (B, N, pts2_t.shape[-1]))
    else:
        dists = square_distance(xyz1_t, xyz2_t)
        neg_d, idx = lax.top_k(-dists, 3)
        d = jnp.maximum(-neg_d, 1e-10)
        w = 1.0 / d
        w = w / jnp.sum(w, axis=-1, keepdims=True)
        gathered = index_points(pts2_t, idx)
        interpolated = jnp.sum(gathered * w[..., None], axis=2)
    if points1 is not None:
        pts1_t = jnp.transpose(points1, (0, 2, 1))
        new_points = jnp.concatenate([pts1_t, interpolated], axis=-1)
    else:
        new_points = interpolated
    h = new_points.reshape(B * N, -1)
    for wT, sh in zip(params["wT"], params["shift"]):
        h = jnp.maximum(jnp.dot(h, wT) + sh, 0.0)
    return jnp.transpose(h.reshape(B, N, -1), (0, 2, 1))


def init_params(key, in_channel, mlp):
    """Synthetic Conv1d(k=1) + BatchNorm1d(eval) params, BN scale folded into W."""
    wT, shift = [], []
    last = in_channel
    keys = jax.random.split(key, 5 * len(mlp))
    eps = 1e-5
    for i, out_c in enumerate(mlp):
        kw, kb, kg, kbt, km = keys[5 * i:5 * i + 5]
        w = 0.1 * jax.random.normal(kw, (out_c, last), jnp.float32)
        b = 0.1 * jax.random.normal(kb, (out_c,), jnp.float32)
        gamma = 1.0 + 0.1 * jax.random.normal(kg, (out_c,), jnp.float32)
        beta = 0.1 * jax.random.normal(kbt, (out_c,), jnp.float32)
        run_mean = 0.1 * jax.random.normal(km, (out_c,), jnp.float32)
        run_var = jnp.ones((out_c,), jnp.float32)
        s = gamma / jnp.sqrt(run_var + eps)
        wT.append(jnp.transpose(w * s[:, None]))            # (Cin, Cout), folded
        shift.append((s * (b - run_mean) + beta).reshape(1, out_c))
        last = out_c
    return {"wT": wT, "shift": shift}


if __name__ == "__main__":
    key = jax.random.PRNGKey(0)
    B, N, S = 2, 16, 8           # batch, dense points, sparse points
    D1, D2 = 4, 8                # skip-feature channels, sparse-feature channels
    mlp = [16, 32]
    in_channel = D1 + D2

    k1, k2, k3, k4, kp = jax.random.split(key, 5)
    xyz1 = jax.random.normal(k1, (B, 3, N), jnp.float32)
    xyz2 = jax.random.normal(k2, (B, 3, S), jnp.float32)
    points1 = jax.random.normal(k3, (B, D1, N), jnp.float32)
    points2 = jax.random.normal(k4, (B, D2, S), jnp.float32)
    params = init_params(kp, in_channel, mlp)

    ref = reference_forward(xyz1, xyz2, points1, points2, params)

    # f32 end-to-end correctness check of the fused kernel.
    out_f32 = pointnet_feature_propagation_forward(
        xyz1, xyz2, points1, points2, params,
        compute_dtype=jnp.float32, out_dtype=jnp.float32)
    jax.block_until_ready((ref, out_f32))
    assert out_f32.shape == (B, mlp[-1], N), out_f32.shape
    assert jnp.allclose(out_f32, ref, atol=1e-2, rtol=1e-2), float(
        jnp.max(jnp.abs(out_f32 - ref)))

    # bf16 fast path (bf16 streams / weights / output, f32 accumulate+epilogue).
    out_bf16 = pointnet_feature_propagation_forward(
        xyz1, xyz2, points1, points2, params)
    jax.block_until_ready(out_bf16)
    assert out_bf16.shape == (B, mlp[-1], N), out_bf16.shape
    assert out_bf16.dtype == jnp.bfloat16
    assert jnp.allclose(out_bf16.astype(jnp.float32), ref,
                        atol=7e-2, rtol=7e-2), float(
        jnp.max(jnp.abs(out_bf16.astype(jnp.float32) - ref)))

    print("KERNEL_OK")
</pallas_src>

<mosaic_0001>
module attributes {stable_mosaic.version = 11 : i64} {
  func.func @kernel(%arg0: i32, %arg1: i32, %arg2: memref<1x128x128xf32, #tpu.memory_space<vmem>>, %arg3: memref<1x8x128xi32, #tpu.memory_space<vmem>>, %arg4: memref<1x8x128xf32, #tpu.memory_space<vmem>>, %arg5: memref<1x128x128xf32, #tpu.memory_space<vmem>>, %arg6: memref<128x128xf32, #tpu.memory_space<vmem>>, %arg7: memref<128x1xf32, #tpu.memory_space<vmem>>, %arg8: memref<128x128xf32, #tpu.memory_space<vmem>>, %arg9: memref<128x1xf32, #tpu.memory_space<vmem>>, %arg10: memref<1x128x128xf32, #tpu.memory_space<vmem>>) attributes {dimension_semantics = [#tpu.dimension_semantics<parallel>, #tpu.dimension_semantics<parallel>], iteration_bounds = array<i64: 2, 1>, scalar_prefetch = 0 : i64, scratch_operands = 0 : i64, tpu.core_type = #tpu.core_type<tc>, window_params = [{transform_indices = @transform_0, window_bounds = array<i64: 1, 128, 128>}, {transform_indices = @transform_1, window_bounds = array<i64: 1, 8, 128>}, {transform_indices = @transform_2, window_bounds = array<i64: 1, 8, 128>}, {transform_indices = @transform_3, window_bounds = array<i64: 1, 128, 128>}, {pipeline_mode = #tpu.pipeline_mode<synchronous>, transform_indices = @transform_4, window_bounds = array<i64: 128, 128>}, {pipeline_mode = #tpu.pipeline_mode<synchronous>, transform_indices = @transform_5, window_bounds = array<i64: 128, 1>}, {pipeline_mode = #tpu.pipeline_mode<synchronous>, transform_indices = @transform_6, window_bounds = array<i64: 128, 128>}, {pipeline_mode = #tpu.pipeline_mode<synchronous>, transform_indices = @transform_7, window_bounds = array<i64: 128, 1>}, {transform_indices = @transform_8, window_bounds = array<i64: 1, 128, 128>}]} {
    %c0 = arith.constant 0 : index
    %c0_0 = arith.constant 0 : index
    %c0_1 = arith.constant 0 : index
    %0 = vector.load %arg3[%c0, %c0_0, %c0_1] : memref<1x8x128xi32, #tpu.memory_space<vmem>>, vector<1x8x128xi32>
    %1 = vector.shape_cast %0 : vector<1x8x128xi32> to vector<8x128xi32>
    %c0_2 = arith.constant 0 : index
    %c0_3 = arith.constant 0 : index
    %c0_4 = arith.constant 0 : index
    %2 = vector.load %arg4[%c0_2, %c0_3, %c0_4] : memref<1x8x128xf32, #tpu.memory_space<vmem>>, vector<1x8x128xf32>
    %3 = vector.shape_cast %2 : vector<1x8x128xf32> to vector<8x128xf32>
    %4 = tpu.iota {dimensions = array<i32: 0>} : vector<128x128xi32>
    %5 = vector.extract_strided_slice %1 {offsets = [0, 0], sizes = [1, 128], strides = [1, 1]} : vector<8x128xi32> to vector<1x128xi32>
    %6 = vector.broadcast %5 : vector<1x128xi32> to vector<128x128xi32>
    %7 = arith.cmpi eq, %4, %6 : vector<128x128xi32>
    %8 = vector.extract_strided_slice %3 {offsets = [0, 0], sizes = [1, 128], strides = [1, 1]} : vector<8x128xf32> to vector<1x128xf32>
    %cst = arith.constant 0.000000e+00 : f32
    %9 = vector.shape_cast %8 : vector<1x128xf32> to vector<1x128xf32>
    %10 = vector.broadcast %9 : vector<1x128xf32> to vector<128x128xf32>
    %11 = vector.broadcast %cst : f32 to vector<128x128xf32>
    %12 = arith.select %7, %10, %11 : vector<128x128xi1>, vector<128x128xf32>
    %13 = vector.extract_strided_slice %1 {offsets = [1, 0], sizes = [1, 128], strides = [1, 1]} : vector<8x128xi32> to vector<1x128xi32>
    %14 = vector.broadcast %13 : vector<1x128xi32> to vector<128x128xi32>
    %15 = arith.cmpi eq, %4, %14 : vector<128x128xi32>
    %16 = vector.extract_strided_slice %3 {offsets = [1, 0], sizes = [1, 128], strides = [1, 1]} : vector<8x128xf32> to vector<1x128xf32>
    %cst_5 = arith.constant 0.000000e+00 : f32
    %17 = vector.shape_cast %16 : vector<1x128xf32> to vector<1x128xf32>
    %18 = vector.broadcast %17 : vector<1x128xf32> to vector<128x128xf32>
    %19 = vector.broadcast %cst_5 : f32 to vector<128x128xf32>
    %20 = arith.select %15, %18, %19 : vector<128x128xi1>, vector<128x128xf32>
    %21 = arith.addf %12, %20 : vector<128x128xf32>
    %22 = vector.extract_strided_slice %1 {offsets = [2, 0], sizes = [1, 128], strides = [1, 1]} : vector<8x128xi32> to vector<1x128xi32>
    %23 = vector.broadcast %22 : vector<1x128xi32> to vector<128x128xi32>
    %24 = arith.cmpi eq, %4, %23 : vector<128x128xi32>
    %25 = vector.extract_strided_slice %3 {offsets = [2, 0], sizes = [1, 128], strides = [1, 1]} : vector<8x128xf32> to vector<1x128xf32>
    %cst_6 = arith.constant 0.000000e+00 : f32
    %26 = vector.shape_cast %25 : vector<1x128xf32> to vector<1x128xf32>
    %27 = vector.broadcast %26 : vector<1x128xf32> to vector<128x128xf32>
    %28 = vector.broadcast %cst_6 : f32 to vector<128x128xf32>
    %29 = arith.select %24, %27, %28 : vector<128x128xi1>, vector<128x128xf32>
    %30 = arith.addf %21, %29 : vector<128x128xf32>
    %c0_7 = arith.constant 0 : index
    %c0_8 = arith.constant 0 : index
    %c0_9 = arith.constant 0 : index
    %31 = vector.load %arg5[%c0_7, %c0_8, %c0_9] : memref<1x128x128xf32, #tpu.memory_space<vmem>>, vector<1x128x128xf32>
    %32 = vector.shape_cast %31 : vector<1x128x128xf32> to vector<128x128xf32>
    %cst_10 = arith.constant dense<0.000000e+00> : vector<128x128xf32>
    %33 = tpu.matmul %32, %30, %cst_10 {dimension_numbers = #tpu.dot_dimension_numbers<[1], [0], [0], [1], [0, 0, 1, 1], [], []>} : vector<128x128xf32>, vector<128x128xf32>, vector<128x128xf32> -> vector<128x128xf32>
    %c0_11 = arith.constant 0 : index
    %c0_12 = arith.constant 0 : index
    %34 = vector.load %arg6[%c0_11, %c0_12] : memref<128x128xf32, #tpu.memory_space<vmem>>, vector<128x128xf32>
    %c0_13 = arith.constant 0 : index
    %c0_14 = arith.constant 0 : index
    %c0_15 = arith.constant 0 : index
    %35 = vector.load %arg2[%c0_13, %c0_14, %c0_15] : memref<1x128x128xf32, #tpu.memory_space<vmem>>, vector<1x128x128xf32>
    %36 = vector.shape_cast %35 : vector<1x128x128xf32> to vector<128x128xf32>
    %cst_16 = arith.constant dense<0.000000e+00> : vector<128x128xf32>
    %37 = tpu.matmul %34, %36, %cst_16 {dimension_numbers = #tpu.dot_dimension_numbers<[1], [0], [0], [1], [0, 0, 1, 1], [], []>} : vector<128x128xf32>, vector<128x128xf32>, vector<128x128xf32> -> vector<128x128xf32>
    %38 = arith.addf %33, %37 : vector<128x128xf32>
    %c0_17 = arith.constant 0 : index
    %c0_18 = arith.constant 0 : index
    %39 = vector.load %arg7[%c0_17, %c0_18] : memref<128x1xf32, #tpu.memory_space<vmem>>, vector<128x1xf32>
    %40 = vector.broadcast %39 : vector<128x1xf32> to vector<128x128xf32>
    %41 = arith.addf %38, %40 : vector<128x128xf32>
    %cst_19 = arith.constant 0.000000e+00 : f32
    %42 = vector.broadcast %cst_19 : f32 to vector<128x128xf32>
    %43 = arith.maximumf %41, %42 : vector<128x128xf32>
    %c0_20 = arith.constant 0 : index
    %c0_21 = arith.constant 0 : index
    %44 = vector.load %arg8[%c0_20, %c0_21] : memref<128x128xf32, #tpu.memory_space<vmem>>, vector<128x128xf32>
    %c0_22 = arith.constant 0 : index
    %c0_23 = arith.constant 0 : index
    %45 = vector.load %arg9[%c0_22, %c0_23] : memref<128x1xf32, #tpu.memory_space<vmem>>, vector<128x1xf32>
    %cst_24 = arith.constant dense<0.000000e+00> : vector<128x128xf32>
    %46 = tpu.matmul %44, %43, %cst_24 {dimension_numbers = #tpu.dot_dimension_numbers<[1], [0], [0], [1], [0, 0, 1, 1], [], []>} : vector<128x128xf32>, vector<128x128xf32>, vector<128x128xf32> -> vector<128x128xf32>
    %47 = vector.broadcast %45 : vector<128x1xf32> to vector<128x128xf32>
    %48 = arith.addf %46, %47 : vector<128x128xf32>
    %cst_25 = arith.constant 0.000000e+00 : f32
    %49 = vector.broadcast %cst_25 : f32 to vector<128x128xf32>
    %50 = arith.maximumf %48, %49 : vector<128x128xf32>
    %c0_26 = arith.constant 0 : index
    %c0_27 = arith.constant 0 : index
    %c0_28 = arith.constant 0 : index
    %51 = vector.load %arg10[%c0_26, %c0_27, %c0_28] : memref<1x128x128xf32, #tpu.memory_space<vmem>>, vector<1x128x128xf32>
    %52 = vector.shape_cast %51 : vector<1x128x128xf32> to vector<128x128xf32>
    %53 = vector.shape_cast %50 : vector<128x128xf32> to vector<1x128x128xf32>
    tpu.vector_store %arg10[%c0_26, %c0_27, %c0_28], %53 {strides = array<i32>} : memref<1x128x128xf32, #tpu.memory_space<vmem>>, vector<1x128x128xf32>,
    return
  }
  func.func @transform_0(%arg0: i32, %arg1: i32) -> (i32, i32, i32) {
    %c0_i32 = arith.constant 0 : i32
    %c0_i32_0 = arith.constant 0 : i32
    return %arg0, %c0_i32, %arg1 : i32, i32, i32
  }
  func.func @transform_1(%arg0: i32, %arg1: i32) -> (i32, i32, i32) {
    %c0_i32 = arith.constant 0 : i32
    %c0_i32_0 = arith.constant 0 : i32
    return %arg0, %c0_i32, %arg1 : i32, i32, i32
  }
  func.func @transform_2(%arg0: i32, %arg1: i32) -> (i32, i32, i32) {
    %c0_i32 = arith.constant 0 : i32
    %c0_i32_0 = arith.constant 0 : i32
    return %arg0, %c0_i32, %arg1 : i32, i32, i32
  }
  func.func @transform_3(%arg0: i32, %arg1: i32) -> (i32, i32, i32) {
    %c0_i32 = arith.constant 0 : i32
    %c0_i32_0 = arith.constant 0 : i32
    %c0_i32_1 = arith.constant 0 : i32
    return %arg0, %c0_i32, %c0_i32_0 : i32, i32, i32
  }
  func.func @transform_4(%arg0: i32, %arg1: i32) -> (i32, i32) {
    %c0_i32 = arith.constant 0 : i32
    %c0_i32_0 = arith.constant 0 : i32
    %c0_i32_1 = arith.constant 0 : i32
    return %c0_i32, %c0_i32_0 : i32, i32
  }
  func.func @transform_5(%arg0: i32, %arg1: i32) -> (i32, i32) {
    %c0_i32 = arith.constant 0 : i32
    %c0_i32_0 = arith.constant 0 : i32
    %c0_i32_1 = arith.constant 0 : i32
    return %c0_i32, %c0_i32_0 : i32, i32
  }
  func.func @transform_6(%arg0: i32, %arg1: i32) -> (i32, i32) {
    %c0_i32 = arith.constant 0 : i32
    %c0_i32_0 = arith.constant 0 : i32
    %c0_i32_1 = arith.constant 0 : i32
    return %c0_i32, %c0_i32_0 : i32, i32
  }
  func.func @transform_7(%arg0: i32, %arg1: i32) -> (i32, i32) {
    %c0_i32 = arith.constant 0 : i32
    %c0_i32_0 = arith.constant 0 : i32
    %c0_i32_1 = arith.constant 0 : i32
    return %c0_i32, %c0_i32_0 : i32, i32
  }
  func.func @transform_8(%arg0: i32, %arg1: i32) -> (i32, i32, i32) {
    %c0_i32 = arith.constant 0 : i32
    %c0_i32_0 = arith.constant 0 : i32
    return %arg0, %c0_i32, %arg1 : i32, i32, i32
  }
}

</mosaic_0001>

<llo_original>
// kernel: tpu_custom_call.1
$region0: #{tpu_custom_call.1}
  #allocation0 [shape = 'u32[]', space=smem, size = 0x4, offset = 0x4, fixed_abs, tag = 'smem constant byte address 0x4 - core index']
  #allocation1 [shape = 'u32[144,128]{1,0:T(1,128)}', space=vmem, size = 0x12000, scoped, tag = 'internal scratch']
  %s0 = inlined_call_operand.vmem [shape: f32[2,128,128], index: 0, kind: input, shape index: {}]
  %s1 = inlined_call_operand.hbm [shape: s32[2,8,128], index: 1, kind: input, shape index: {}]
  %s2 = inlined_call_operand.hbm [shape: f32[2,8,128], index: 2, kind: input, shape index: {}]
  %s3 = inlined_call_operand.hbm [shape: f32[2,128,128], index: 3, kind: input, shape index: {}]
  %s4 = inlined_call_operand.hbm [shape: f32[128,128], index: 4, kind: input, shape index: {}]
  %s5 = inlined_call_operand.vmem [shape: f32[128,1], index: 5, kind: input, shape index: {}]
  %s6 = inlined_call_operand.hbm [shape: f32[128,128], index: 6, kind: input, shape index: {}]
  %s7 = inlined_call_operand.vmem [shape: f32[128,1], index: 7, kind: input, shape index: {}]
  %s8 = inlined_call_operand.hbm [shape: f32[2,128,128], index: 8, kind: output, shape index: {}]
  %s9 = sld [smem:[#allocation0]]
  $region85: #{tpu_custom_call.1} parent=0
    _
  %s11 = ssub.s32 1, %s9
  %s12 = scalar_select 0, %s11, %s9
  $region1: #{tpu_custom_call.1} parent=0
    #allocation2 [shape = 'u8[8192]{0}', space=vmem, size = 0x2000, scoped, tag = 'input window, operand 1']
    #allocation3 [shape = 's32[2]{0}', space=sflag, size = 0x8, scoped, tag = 'scoped memory for tpu_custom_call.1']
    #allocation4 [shape = 's32[2]{0}', space=sflag, size = 0x8, scoped, tag = 'scoped memory for tpu_custom_call.1']
    #allocation5 [shape = 'u8[8192]{0}', space=vmem, size = 0x2000, scoped, tag = 'input window, operand 2']
    #allocation6 [shape = 's32[2]{0}', space=sflag, size = 0x8, scoped, tag = 'scoped memory for tpu_custom_call.1']
    #allocation7 [shape = 'u8[131072]{0}', space=vmem, size = 0x20000, scoped, tag = 'input window, operand 3']
    #allocation8 [shape = 'u8[65536]{0}', space=vmem, size = 0x10000, scoped, tag = 'input window, operand 4, single buffered']
    #allocation9 [shape = 's32[1]{0}', space=sflag, size = 0x4, scoped, tag = 'scoped memory for tpu_custom_call.1']
    #allocation10 [shape = 'u8[65536]{0}', space=vmem, size = 0x10000, scoped, tag = 'input window, operand 6, single buffered']
    #allocation11 [shape = 'u8[131072]{0}', space=vmem, size = 0x20000, scoped, tag = 'output window, operand 0']
    %13 = vsyncpa [#allocation3], 0
    %s14 = scalar_lea.sflag [#allocation3], 1
    %15 = vsyncpa %s14, 0
    %16 = vsyncpa [#allocation6], 0
    %s17 = scalar_lea.sflag [#allocation6], 1
    %18 = vsyncpa %s17, 0
    %19 = vsyncpa [#allocation9], 0
    %20 = vsyncpa [#allocation4], 0
    %s21 = scalar_lea.sflag [#allocation4], 1
    %22 = vsyncpa %s21, 0
    loop: start=0, step=1, limit=4
    $region2: #{tpu_custom_call.1} parent=1 // loop_pre_header
      _
    $region3: #{tpu_custom_call.1} parent=1 // loop_header
      %s24 = sphi 0, %s28
      %p25 = scmp.ge.s32.totalorder %s24, 4
      %s31 = sphi 0, %s43
      %s32 = sphi 0, %s39
      %s33 = sphi 0, %s31
      %s34 = sphi 0, %s32
      %s35 = sphi 0, %s33
      %s36 = sphi 0, %s34
      %s48 = sphi 0, %s50
      %s51 = sphi 0, %s48
      %s52 = sphi 0, %s51
      %s68 = sphi 0, %s52
      %s76 = sphi 0, %s78
      %s79 = sphi 0, %s76
      %s80 = sphi 0, %s79
      %s96 = sphi 0, %s80
      %s104 = sphi 0, %s106
      %s107 = sphi 0, %s104
      %s108 = sphi 0, %s107
      %s124 = sphi 0, %s108
      %s130 = sphi 0, %s132
      %s133 = sphi 0, %s130
      %s134 = sphi 0, %s133
      %s150 = sphi 0, %s134
      %s154 = sphi 0, %s154
      %s156 = sphi 0, %s154
      %s157 = sphi 0, %s156
      %s171 = sphi 0, %s157
      %s175 = sphi 0, %s175
      %s177 = sphi 0, %s175
      %s178 = sphi 0, %s177
      %s192 = sphi 0, %s178
      %s196 = sphi 0, %s196
      %s198 = sphi 0, %s196
      %s199 = sphi 0, %s198
      %s213 = sphi 0, %s199
      %s217 = sphi 0, %s217
      %s219 = sphi 0, %s217
      %s220 = sphi 0, %s219
      %s234 = sphi 0, %s220
      %s242 = sphi 0, %s244
      %s245 = sphi 0, %s242
      %s246 = sphi 0, %s245
      %s262 = sphi 0, %s246
    $region4: #{tpu_custom_call.1} parent=1 // loop_header_branch
      %27 = sbr.rel (%p25) target = $region8
    $region5: #{tpu_custom_call.1} parent=1 // loop_body
      %s29 = ssub.s32 %s24, 1
      %s30 = ssub.s32 %s24, 2
      %s37 = sadd.s32 1, %s32
      %p38 = scmp.ge.s32.totalorder %s37, 1
      %s39 = scalar_select %p38, 0, %s37
      %s40 = sadd.s32 1, %s31
      %s41 = scalar_select %p38, %s40, %s31
      %p42 = scmp.ge.s32.totalorder %s41, 2
      %s43 = scalar_select %p42, 0, %s41
      %s44 = ssub.s32 %s31, %s43
      %s45 = ssub.s32 %s32, %s39
      %s46 = sor.u32 %s44, %s45
      %p47 = scmp.eq.s32.totalorder %s46, 0
      %s49 = sadd.s32 %s48, 1
      %s50 = scalar_select %p47, %s48, %s49
      %p53 = pneg %p47
      %p54 = scmp.eq.s32.totalorder %s24, 1
      %p55 = por %p53, %p54
      %p56 = scmp.ne.s32.totalorder %s48, %s51
      %p57 = scmp.eq.s32.totalorder %s24, 0
      %p58 = por %p56, %p57
      %p59 = scmp.ne.s32.totalorder %s48, %s51
      %p60 = scmp.eq.s32.totalorder %s29, 1
      %p61 = por %p59, %p60
      %p62 = scmp.ne.s32.totalorder %s51, %s52
      %p63 = scmp.eq.s32.totalorder %s29, 0
      %p64 = por %p62, %p63
      %p65 = scmp.ne.s32.totalorder %s51, %s52
      %p66 = scmp.eq.s32.totalorder %s30, 1
      %p67 = por %p65, %p66
      %p69 = scmp.ne.s32.totalorder %s52, %s68
      %p70 = scmp.eq.s32.totalorder %s30, 0
      %p71 = por %p69, %p70
      %s72 = ssub.s32 %s31, %s43
      %s73 = ssub.s32 %s32, %s39
      %s74 = sor.u32 %s72, %s73
      %p75 = scmp.eq.s32.totalorder %s74, 0
      %s77 = sadd.s32 %s76, 1
      %s78 = scalar_select %p75, %s76, %s77
      %p81 = pneg %p75
      %p82 = scmp.eq.s32.totalorder %s24, 1
      %p83 = por %p81, %p82
      %p84 = scmp.ne.s32.totalorder %s76, %s79
      %p85 = scmp.eq.s32.totalorder %s24, 0
      %p86 = por %p84, %p85
      %p87 = scmp.ne.s32.totalorder %s76, %s79
      %p88 = scmp.eq.s32.totalorder %s29, 1
      %p89 = por %p87, %p88
      %p90 = scmp.ne.s32.totalorder %s79, %s80
      %p91 = scmp.eq.s32.totalorder %s29, 0
      %p92 = por %p90, %p91
      %p93 = scmp.ne.s32.totalorder %s79, %s80
      %p94 = scmp.eq.s32.totalorder %s30, 1
      %p95 = por %p93, %p94
      %p97 = scmp.ne.s32.totalorder %s80, %s96
      %p98 = scmp.eq.s32.totalorder %s30, 0
      %p99 = por %p97, %p98
      %s100 = ssub.s32 %s31, %s43
      %s101 = ssub.s32 %s32, %s39
      %s102 = sor.u32 %s100, %s101
      %p103 = scmp.eq.s32.totalorder %s102, 0
      %s105 = sadd.s32 %s104, 1
      %s106 = scalar_select %p103, %s104, %s105
      %p109 = pneg %p103
      %p110 = scmp.eq.s32.totalorder %s24, 1
      %p111 = por %p109, %p110
      %p112 = scmp.ne.s32.totalorder %s104, %s107
      %p113 = scmp.eq.s32.totalorder %s24, 0
      %p114 = por %p112, %p113
      %p115 = scmp.ne.s32.totalorder %s104, %s107
      %p116 = scmp.eq.s32.totalorder %s29, 1
      %p117 = por %p115, %p116
      %p118 = scmp.ne.s32.totalorder %s107, %s108
      %p119 = scmp.eq.s32.totalorder %s29, 0
      %p120 = por %p118, %p119
      %p121 = scmp.ne.s32.totalorder %s107, %s108
      %p122 = scmp.eq.s32.totalorder %s30, 1
      %p123 = por %p121, %p122
      %p125 = scmp.ne.s32.totalorder %s108, %s124
      %p126 = scmp.eq.s32.totalorder %s30, 0
      %p127 = por %p125, %p126
      %s128 = ssub.s32 %s31, %s43
      %p129 = scmp.eq.s32.totalorder %s128, 0
      %s131 = sadd.s32 %s130, 1
      %s132 = scalar_select %p129, %s130, %s131
      %p135 = pneg %p129
      %p136 = scmp.eq.s32.totalorder %s24, 1
      %p137 = por %p135, %p136
      %p138 = scmp.ne.s32.totalorder %s130, %s133
      %p139 = scmp.eq.s32.totalorder %s24, 0
      %p140 = por %p138, %p139
      %p141 = scmp.ne.s32.totalorder %s130, %s133
      %p142 = scmp.eq.s32.totalorder %s29, 1
      %p143 = por %p141, %p142
      %p144 = scmp.ne.s32.totalorder %s133, %s134
      %p145 = scmp.eq.s32.totalorder %s29, 0
      %p146 = por %p144, %p145
      %p147 = scmp.ne.s32.totalorder %s133, %s134
      %p148 = scmp.eq.s32.totalorder %s30, 1
      %p149 = por %p147, %p148
      %p151 = scmp.ne.s32.totalorder %s134, %s150
      %p152 = scmp.eq.s32.totalorder %s30, 0
      %p153 = por %p151, %p152
      %s155 = sadd.s32 %s154, 1
      %p158 = scmp.eq.s32.totalorder %s24, 1
      %p159 = scmp.ne.s32.totalorder %s154, %s156
      %p160 = scmp.eq.s32.totalorder %s24, 0
      %p161 = por %p159, %p160
      %p162 = scmp.ne.s32.totalorder %s154, %s156
      %p163 = scmp.eq.s32.totalorder %s29, 1
      %p164 = por %p162, %p163
      %p165 = scmp.ne.s32.totalorder %s156, %s157
      %p166 = scmp.eq.s32.totalorder %s29, 0
      %p167 = por %p165, %p166
      %p168 = scmp.ne.s32.totalorder %s156, %s157
      %p169 = scmp.eq.s32.totalorder %s30, 1
      %p170 = por %p168, %p169
      %p172 = scmp.ne.s32.totalorder %s157, %s171
      %p173 = scmp.eq.s32.totalorder %s30, 0
      %p174 = por %p172, %p173
      %s176 = sadd.s32 %s175, 1
      %p179 = scmp.eq.s32.totalorder %s24, 1
      %p180 = scmp.ne.s32.totalorder %s175, %s177
      %p181 = scmp.eq.s32.totalorder %s24, 0
      %p182 = por %p180, %p181
      %p183 = scmp.ne.s32.totalorder %s175, %s177
      %p184 = scmp.eq.s32.totalorder %s29, 1
      %p185 = por %p183, %p184
      %p186 = scmp.ne.s32.totalorder %s177, %s178
      %p187 = scmp.eq.s32.totalorder %s29, 0
      %p188 = por %p186, %p187
      %p189 = scmp.ne.s32.totalorder %s177, %s178
      %p190 = scmp.eq.s32.totalorder %s30, 1
      %p191 = por %p189, %p190
      %p193 = scmp.ne.s32.totalorder %s178, %s192
      %p194 = scmp.eq.s32.totalorder %s30, 0
      %p195 = por %p193, %p194
      %s197 = sadd.s32 %s196, 1
      %p200 = scmp.eq.s32.totalorder %s24, 1
      %p201 = scmp.ne.s32.totalorder %s196, %s198
      %p202 = scmp.eq.s32.totalorder %s24, 0
      %p203 = por %p201, %p202
      %p204 = scmp.ne.s32.totalorder %s196, %s198
      %p205 = scmp.eq.s32.totalorder %s29, 1
      %p206 = por %p204, %p205
      %p207 = scmp.ne.s32.totalorder %s198, %s199
      %p208 = scmp.eq.s32.totalorder %s29, 0
      %p209 = por %p207, %p208
      %p210 = scmp.ne.s32.totalorder %s198, %s199
      %p211 = scmp.eq.s32.totalorder %s30, 1
      %p212 = por %p210, %p211
      %p214 = scmp.ne.s32.totalorder %s199, %s213
      %p215 = scmp.eq.s32.totalorder %s30, 0
      %p216 = por %p214, %p215
      %s218 = sadd.s32 %s217, 1
      %p221 = scmp.eq.s32.totalorder %s24, 1
      %p222 = scmp.ne.s32.totalorder %s217, %s219
      %p223 = scmp.eq.s32.totalorder %s24, 0
      %p224 = por %p222, %p223
      %p225 = scmp.ne.s32.totalorder %s217, %s219
      %p226 = scmp.eq.s32.totalorder %s29, 1
      %p227 = por %p225, %p226
      %p228 = scmp.ne.s32.totalorder %s219, %s220
      %p229 = scmp.eq.s32.totalorder %s29, 0
      %p230 = por %p228, %p229
      %p231 = scmp.ne.s32.totalorder %s219, %s220
      %p232 = scmp.eq.s32.totalorder %s30, 1
      %p233 = por %p231, %p232
      %p235 = scmp.ne.s32.totalorder %s220, %s234
      %p236 = scmp.eq.s32.totalorder %s30, 0
      %p237 = por %p235, %p236
      %s238 = ssub.s32 %s31, %s43
      %s239 = ssub.s32 %s32, %s39
      %s240 = sor.u32 %s238, %s239
      %p241 = scmp.eq.s32.totalorder %s240, 0
      %s243 = sadd.s32 %s242, 1
      %s244 = scalar_select %p241, %s242, %s243
      %p247 = pneg %p241
      %p248 = scmp.eq.s32.totalorder %s24, 1
      %p249 = por %p247, %p248
      %p250 = scmp.ne.s32.totalorder %s242, %s245
      %p251 = scmp.eq.s32.totalorder %s24, 0
      %p252 = por %p250, %p251
      %p253 = scmp.ne.s32.totalorder %s242, %s245
      %p254 = scmp.eq.s32.totalorder %s29, 1
      %p255 = por %p253, %p254
      %p256 = scmp.ne.s32.totalorder %s245, %s246
      %p257 = scmp.eq.s32.totalorder %s29, 0
      %p258 = por %p256, %p257
      %p259 = scmp.ne.s32.totalorder %s245, %s246
      %p260 = scmp.eq.s32.totalorder %s30, 1
      %p261 = por %p259, %p260
      %p263 = scmp.ne.s32.totalorder %s246, %s262
      %p264 = scmp.eq.s32.totalorder %s30, 0
      %p265 = por %p263, %p264
      %p266 = scmp.le.s32.totalorder 1, %s24
      %p267 = scmp.lt.s32.totalorder %s24, 3
      %p268 = pnand %p266, %p267
      %p269 = pneg %p268
      // Predicated region
      $region9: #{tpu_custom_call.1} parent=5 // pred_check
        _
      $region10: #{tpu_custom_call.1} parent=5 // pred_check_branch
        %271 = sbr.rel (%p268) target = $region12
      $region11: #{tpu_custom_call.1} parent=5 // pred_region
        %s272 = ssub.s32 %s24, 1
        // Predicated region
        $region13: #{tpu_custom_call.1} parent=11 // pred_check
          %p273 = pneg %p167
        $region14: #{tpu_custom_call.1} parent=11 // pred_check_branch
          %275 = sbr.rel (%p273) target = $region16
        $region15: #{tpu_custom_call.1} parent=11 // pred_region
          %s277 = ssub.s32 2048, 2048
          %278 = vsyncadd [#allocation9], %s277
          %s279 = sshll.u32 [#allocation8], 4
          %s280 = int_to_ptr.vmem [resolvable:$true] %s279
          %285 = dma.hbm_to_vmem [thread:$0]  %s4, 2048, %s280, [#allocation9], 128, 128, 8
        $region16: #{tpu_custom_call.1} parent=11 // pred_fallthru
          _
        // Predicated region
        $region17: #{tpu_custom_call.1} parent=11 // pred_check
          %p286 = pneg %p188
        $region18: #{tpu_custom_call.1} parent=11 // pred_check_branch
          %288 = sbr.rel (%p286) target = $region20
        $region19: #{tpu_custom_call.1} parent=11 // pred_region
          _
        $region20: #{tpu_custom_call.1} parent=11 // pred_fallthru
          _
        // Predicated region
        $region21: #{tpu_custom_call.1} parent=11 // pred_check
          %p289 = pneg %p209
        $region22: #{tpu_custom_call.1} parent=11 // pred_check_branch
          %291 = sbr.rel (%p289) target = $region24
        $region23: #{tpu_custom_call.1} parent=11 // pred_region
          %s293 = ssub.s32 2048, 2048
          %294 = vsyncadd [#allocation9], %s293
          %s295 = sshll.u32 [#allocation10], 4
          %s296 = int_to_ptr.vmem [resolvable:$true] %s295
          %301 = dma.hbm_to_vmem [thread:$0]  %s6, 2048, %s296, [#allocation9], 128, 128, 8
        $region24: #{tpu_custom_call.1} parent=11 // pred_fallthru
          _
        // Predicated region
        $region25: #{tpu_custom_call.1} parent=11 // pred_check
          %p302 = pneg %p230
        $region26: #{tpu_custom_call.1} parent=11 // pred_check_branch
          %304 = sbr.rel (%p302) target = $region28
        $region27: #{tpu_custom_call.1} parent=11 // pred_region
          _
        $region28: #{tpu_custom_call.1} parent=11 // pred_fallthru
          _
      $region12: #{tpu_custom_call.1} parent=5 // pred_fallthru
        _
      %p305 = scmp.lt.s32.totalorder %s24, 2
      // Predicated region
      $region29: #{tpu_custom_call.1} parent=5 // pred_check
        %p306 = pneg %p305
      $region30: #{tpu_custom_call.1} parent=5 // pred_check_branch
        %308 = sbr.rel (%p306) target = $region32
      $region31: #{tpu_custom_call.1} parent=5 // pred_region
        // Predicated region
        $region33: #{tpu_custom_call.1} parent=31 // pred_check
          %p309 = pneg %p58
        $region34: #{tpu_custom_call.1} parent=31 // pred_check_branch
          %311 = sbr.rel (%p309) target = $region36
        $region35: #{tpu_custom_call.1} parent=31 // pred_region
          %p312 = scmp.lt.s32.totalorder %s31, 1
          %s313 = scalar_select %p312, %s31, 1
          %p314 = scmp.lt.s32.totalorder %s32, 0
          %s315 = scalar_select %p314, %s32, 0
          %s316 = smul.addr %s313, 16
          %s317 = sadd.s32 %s315, %s316
          %s318 = smul.addr %s317, 8
          %s319 = scalar_lea.vmem %s0, %s318
        $region36: #{tpu_custom_call.1} parent=31 // pred_fallthru
          _
        // Predicated region
        $region37: #{tpu_custom_call.1} parent=31 // pred_check
          %p320 = pneg %p86
        $region38: #{tpu_custom_call.1} parent=31 // pred_check_branch
          %322 = sbr.rel (%p320) target = $region40
        $region39: #{tpu_custom_call.1} parent=31 // pred_region
          %s323 = sand.u32 %s76, 1
          %s324 = scalar_lea.sflag [#allocation3], %s323
          %s325 = sand.u32 %s76, 1
          %s326 = smul.addr %s325, 8
          %s327 = scalar_lea.vmem [#allocation2], %s326
          %s329 = ssub.s32 128, 128
          %330 = vsyncadd %s324, %s329
          %s331 = sadd.s32 %s32, %s31
          %s332 = smul.addr %s331, 128
          %s333 = scalar_lea.hbm %s1, %s332
          %s335 = sshll.u32 %s327, 4
          %s336 = int_to_ptr.vmem [resolvable:$true] %s335
          %338 = dma.hbm_to_vmem [thread:$0]  %s333, 128, %s336, %s324
        $region40: #{tpu_custom_call.1} parent=31 // pred_fallthru
          _
        // Predicated region
        $region41: #{tpu_custom_call.1} parent=31 // pred_check
          %p339 = pneg %p114
        $region42: #{tpu_custom_call.1} parent=31 // pred_check_branch
          %341 = sbr.rel (%p339) target = $region44
        $region43: #{tpu_custom_call.1} parent=31 // pred_region
          %s342 = sand.u32 %s24, 1
          %s343 = scalar_lea.sflag [#allocation6], %s342
          %s344 = sand.u32 %s104, 1
          %s345 = smul.addr %s344, 8
          %s346 = scalar_lea.vmem [#allocation5], %s345
          %s348 = ssub.s32 128, 128
          %349 = vsyncadd %s343, %s348
          %s350 = sadd.s32 %s32, %s31
          %s351 = smul.addr %s350, 128
          %s352 = scalar_lea.hbm %s2, %s351
          %s354 = sshll.u32 %s346, 4
          %s355 = int_to_ptr.vmem [resolvable:$true] %s354
          %357 = dma.hbm_to_vmem [thread:$0]  %s352, 128, %s355, %s343
        $region44: #{tpu_custom_call.1} parent=31 // pred_fallthru
          _
        // Predicated region
        $region45: #{tpu_custom_call.1} parent=31 // pred_check
          %p358 = pneg %p140
        $region46: #{tpu_custom_call.1} parent=31 // pred_check_branch
          %360 = sbr.rel (%p358) target = $region48
        $region47: #{tpu_custom_call.1} parent=31 // pred_region
          %s361 = sand.u32 %s24, 1
          %s362 = scalar_lea.sflag [#allocation6], %s361
          %s363 = sand.u32 %s130, 1
          %s364 = smul.addr %s363, 128
          %s365 = scalar_lea.vmem [#allocation7], %s364
          %s367 = ssub.s32 2048, 2048
          %368 = vsyncadd %s362, %s367
          %s369 = smul.addr %s31, 16
          %s370 = smul.addr %s369, 128
          %s371 = scalar_lea.hbm %s3, %s370
          %s372 = sshll.u32 %s365, 4
          %s373 = int_to_ptr.vmem [resolvable:$true] %s372
          %378 = dma.hbm_to_vmem [thread:$0]  %s371, 2048, %s373, %s362, 128, 128, 8
        $region48: #{tpu_custom_call.1} parent=31 // pred_fallthru
          _
      $region32: #{tpu_custom_call.1} parent=5 // pred_fallthru
        _
      %p379 = scmp.le.s32.totalorder 1, %s24
      %p380 = scmp.lt.s32.totalorder %s24, 3
      %p381 = pnand %p379, %p380
      %p382 = pneg %p381
      // Predicated region
      $region49: #{tpu_custom_call.1} parent=5 // pred_check
        _
      $region50: #{tpu_custom_call.1} parent=5 // pred_check_branch
        %384 = sbr.rel (%p381) target = $region52
      $region51: #{tpu_custom_call.1} parent=5 // pred_region
        %s385 = ssub.s32 %s24, 1
        %s386 = sand.u32 %s79, 1
        %s387 = scalar_lea.sflag [#allocation3], %s386
        %s388 = sand.u32 %s79, 1
        %s389 = smul.addr %s388, 8
        %s390 = scalar_lea.vmem [#allocation2], %s389
        // Predicated region
        $region53: #{tpu_custom_call.1} parent=51 // pred_check
          %p391 = pneg %p92
        $region54: #{tpu_custom_call.1} parent=51 // pred_check_branch
          %393 = sbr.rel (%p391) target = $region56
        $region55: #{tpu_custom_call.1} parent=51 // pred_region
          %394 = dma.done %s387, 128
        $region56: #{tpu_custom_call.1} parent=51 // pred_fallthru
          _
        %s395 = sand.u32 %s29, 1
        %s396 = scalar_lea.sflag [#allocation6], %s395
        %s397 = sand.u32 %s107, 1
        %s398 = smul.addr %s397, 8
        %s399 = scalar_lea.vmem [#allocation5], %s398
        // Predicated region
        $region57: #{tpu_custom_call.1} parent=51 // pred_check
          %p400 = pneg %p120
        $region58: #{tpu_custom_call.1} parent=51 // pred_check_branch
          %402 = sbr.rel (%p400) target = $region60
        $region59: #{tpu_custom_call.1} parent=51 // pred_region
          %403 = dma.done %s396, 128
        $region60: #{tpu_custom_call.1} parent=51 // pred_fallthru
          _
        %s404 = sand.u32 %s29, 1
        %s405 = scalar_lea.sflag [#allocation6], %s404
        %s406 = sand.u32 %s133, 1
        %s407 = smul.addr %s406, 128
        %s408 = scalar_lea.vmem [#allocation7], %s407
        // Predicated region
        $region61: #{tpu_custom_call.1} parent=51 // pred_check
          %p409 = pneg %p146
        $region62: #{tpu_custom_call.1} parent=51 // pred_check_branch
          %411 = sbr.rel (%p409) target = $region64
        $region63: #{tpu_custom_call.1} parent=51 // pred_region
          %412 = dma.done %s405, 2048
        $region64: #{tpu_custom_call.1} parent=51 // pred_fallthru
          _
        // Predicated region
        $region65: #{tpu_custom_call.1} parent=51 // pred_check
          %p413 = pneg %p167
        $region66: #{tpu_custom_call.1} parent=51 // pred_check_branch
          %415 = sbr.rel (%p413) target = $region68
        $region67: #{tpu_custom_call.1} parent=51 // pred_region
          %416 = dma.done [#allocation9], 2048
        $region68: #{tpu_custom_call.1} parent=51 // pred_fallthru
          _
        // Predicated region
        $region69: #{tpu_custom_call.1} parent=51 // pred_check
          %p417 = pneg %p209
        $region70: #{tpu_custom_call.1} parent=51 // pred_check_branch
          %419 = sbr.rel (%p417) target = $region72
        $region71: #{tpu_custom_call.1} parent=51 // pred_region
          %420 = dma.done [#allocation9], 2048
        $region72: #{tpu_custom_call.1} parent=51 // pred_fallthru
          _
        %p421 = scmp.lt.s32.totalorder %s33, 1
        %s422 = scalar_select %p421, %s33, 1
        %p423 = scmp.lt.s32.totalorder %s34, 0
        %s424 = scalar_select %p423, %s34, 0
        %s425 = smul.addr %s422, 16
        %s426 = sadd.s32 %s424, %s425
        %s427 = smul.addr %s426, 8
        %s428 = scalar_lea.vmem %s0, %s427
        %p429 = pneg %p64
        %p430 = pneg %p61
        %s431 = sand.u32 %s79, 1
        %s432 = scalar_lea.sflag [#allocation3], %s431
        %s433 = sand.u32 %s79, 1
        %s434 = smul.addr %s433, 8
        %s435 = scalar_lea.vmem [#allocation2], %s434
        %p436 = pneg %p92
        %p437 = pneg %p89
        %s438 = sand.u32 %s29, 1
        %s439 = scalar_lea.sflag [#allocation6], %s438
        %s440 = sand.u32 %s107, 1
        %s441 = smul.addr %s440, 8
        %s442 = scalar_lea.vmem [#allocation5], %s441
        %p443 = pneg %p120
        %p444 = pneg %p117
        %s445 = sand.u32 %s29, 1
        %s446 = scalar_lea.sflag [#allocation6], %s445
        %s447 = sand.u32 %s133, 1
        %s448 = smul.addr %s447, 128
        %s449 = scalar_lea.vmem [#allocation7], %s448
        %p450 = pneg %p146
        %p451 = pneg %p143
        %p452 = pneg %p167
        %p453 = pneg %p164
        %p454 = pneg %p188
        %p455 = pneg %p185
        %p456 = pneg %p209
        %p457 = pneg %p206
        %p458 = pneg %p230
        %p459 = pneg %p227
        %p460 = pneg %p258
        %p461 = pneg %p255
        %s462 = sand.u32 %s245, 1
        %s463 = scalar_lea.sflag [#allocation4], %s462
        %s464 = sand.u32 %s245, 1
        %s465 = smul.addr %s464, 128
        %s466 = scalar_lea.vmem [#allocation11], %s465
        %p467 = scmp.lt.s32.totalorder %s33, 1
        %s468 = scalar_select %p467, %s33, 1
        %p469 = scmp.lt.s32.totalorder %s34, 0
        %s470 = scalar_select %p469, %s34, 0
        %s471 = smul.addr %s468, 16
        %s472 = sadd.s32 %s470, %s471
        %s473 = smul.addr %s472, 8
        %s474 = scalar_lea.vmem %s0, %s473
        %v475 = vld [vmem:[%s390] sm:$0xff]
        %v476 = vld [vmem:[%s399] sm:$0xff]
        %v477 = vlaneseq
        %v478 = vshrl.u32 %v477, 7
        %v479 = vadd.s32 %v478, 8
        %v480 = vadd.s32 %v478, 16
        %v481 = vadd.s32 %v478, 24
        %v482 = vadd.s32 %v478, 32
        %v483 = vadd.s32 %v478, 40
        %v484 = vadd.s32 %v478, 48
        %v485 = vadd.s32 %v478, 56
        %v486 = vadd.s32 %v478, 64
        %v487 = vadd.s32 %v478, 72
        %v488 = vadd.s32 %v478, 80
        %v489 = vadd.s32 %v478, 88
        %v490 = vadd.s32 %v478, 96
        %v491 = vadd.s32 %v478, 104
        %v492 = vadd.s32 %v478, 112
        %v493 = vadd.s32 %v478, 120
        %v494 = vlaneseq
        %v495 = vshrl.u32 %v494, 7
        %v496 = vsub.s32 0, %v495
        %v497 = vrot.slane %v475, %v496
        %vm498 = vcmp.eq.s32.totalorder %v478, %v497
        %vm499 = vcmp.eq.s32.totalorder %v479, %v497
        %vm500 = vcmp.eq.s32.totalorder %v480, %v497
        %vm501 = vcmp.eq.s32.totalorder %v481, %v497
        %vm502 = vcmp.eq.s32.totalorder %v482, %v497
        %vm503 = vcmp.eq.s32.totalorder %v483, %v497
        %vm504 = vcmp.eq.s32.totalorder %v484, %v497
        %vm505 = vcmp.eq.s32.totalorder %v485, %v497
        %vm506 = vcmp.eq.s32.totalorder %v486, %v497
        %vm507 = vcmp.eq.s32.totalorder %v487, %v497
        %vm508 = vcmp.eq.s32.totalorder %v488, %v497
        %vm509 = vcmp.eq.s32.totalorder %v489, %v497
        %vm510 = vcmp.eq.s32.totalorder %v490, %v497
        %vm511 = vcmp.eq.s32.totalorder %v491, %v497
        %vm512 = vcmp.eq.s32.totalorder %v492, %v497
        %vm513 = vcmp.eq.s32.totalorder %v493, %v497
        %v514 = vlaneseq
        %v515 = vshrl.u32 %v514, 7
        %v516 = vsub.s32 0, %v515
        %v517 = vrot.slane %v476, %v516
        %v518 = vsel %vm498, %v517, 0.0
        %v519 = vsel %vm499, %v517, 0.0
        %v520 = vsel %vm500, %v517, 0.0
        %v521 = vsel %vm501, %v517, 0.0
        %v522 = vsel %vm502, %v517, 0.0
        %v523 = vsel %vm503, %v517, 0.0
        %v524 = vsel %vm504, %v517, 0.0
        %v525 = vsel %vm505, %v517, 0.0
        %v526 = vsel %vm506, %v517, 0.0
        %v527 = vsel %vm507, %v517, 0.0
        %v528 = vsel %vm508, %v517, 0.0
        %v529 = vsel %vm509, %v517, 0.0
        %v530 = vsel %vm510, %v517, 0.0
        %v531 = vsel %vm511, %v517, 0.0
        %v532 = vsel %vm512, %v517, 0.0
        %v533 = vsel %vm513, %v517, 0.0
        %v534 = vlaneseq
        %v535 = vshrl.u32 %v534, 7
        %v536 = vsub.s32 1, %v535
        %v537 = vrot.slane %v475, %v536
        %vm538 = vcmp.eq.s32.totalorder %v478, %v537
        %vm539 = vcmp.eq.s32.totalorder %v479, %v537
        %vm540 = vcmp.eq.s32.totalorder %v480, %v537
        %vm541 = vcmp.eq.s32.totalorder %v481, %v537
        %vm542 = vcmp.eq.s32.totalorder %v482, %v537
        %vm543 = vcmp.eq.s32.totalorder %v483, %v537
        %vm544 = vcmp.eq.s32.totalorder %v484, %v537
        %vm545 = vcmp.eq.s32.totalorder %v485, %v537
        %vm546 = vcmp.eq.s32.totalorder %v486, %v537
        %vm547 = vcmp.eq.s32.totalorder %v487, %v537
        %vm548 = vcmp.eq.s32.totalorder %v488, %v537
        %vm549 = vcmp.eq.s32.totalorder %v489, %v537
        %vm550 = vcmp.eq.s32.totalorder %v490, %v537
        %vm551 = vcmp.eq.s32.totalorder %v491, %v537
        %vm552 = vcmp.eq.s32.totalorder %v492, %v537
        %vm553 = vcmp.eq.s32.totalorder %v493, %v537
        %v554 = vlaneseq
        %v555 = vshrl.u32 %v554, 7
        %v556 = vsub.s32 1, %v555
        %v557 = vrot.slane %v476, %v556
        %v558 = vsel %vm538, %v557, 0.0
        %v559 = vsel %vm539, %v557, 0.0
        %v560 = vsel %vm540, %v557, 0.0
        %v561 = vsel %vm541, %v557, 0.0
        %v562 = vsel %vm542, %v557, 0.0
        %v563 = vsel %vm543, %v557, 0.0
        %v564 = vsel %vm544, %v557, 0.0
        %v565 = vsel %vm545, %v557, 0.0
        %v566 = vsel %vm546, %v557, 0.0
        %v567 = vsel %vm547, %v557, 0.0
        %v568 = vsel %vm548, %v557, 0.0
        %v569 = vsel %vm549, %v557, 0.0
        %v570 = vsel %vm550, %v557, 0.0
        %v571 = vsel %vm551, %v557, 0.0
        %v572 = vsel %vm552, %v557, 0.0
        %v573 = vsel %vm553, %v557, 0.0
        %v574 = vadd.f32 %v518, %v558
        %v575 = vadd.f32 %v519, %v559
        %v576 = vadd.f32 %v520, %v560
        %v577 = vadd.f32 %v521, %v561
        %v578 = vadd.f32 %v522, %v562
        %v579 = vadd.f32 %v523, %v563
        %v580 = vadd.f32 %v524, %v564
        %v581 = vadd.f32 %v525, %v565
        %v582 = vadd.f32 %v526, %v566
        %v583 = vadd.f32 %v527, %v567
        %v584 = vadd.f32 %v528, %v568
        %v585 = vadd.f32 %v529, %v569
        %v586 = vadd.f32 %v530, %v570
        %v587 = vadd.f32 %v531, %v571
        %v588 = vadd.f32 %v532, %v572
        %v589 = vadd.f32 %v533, %v573
        %v590 = vlaneseq
        %v591 = vshrl.u32 %v590, 7
        %v592 = vsub.s32 2, %v591
        %v593 = vrot.slane %v475, %v592
        %vm594 = vcmp.eq.s32.totalorder %v478, %v593
        %vm595 = vcmp.eq.s32.totalorder %v479, %v593
        %vm596 = vcmp.eq.s32.totalorder %v480, %v593
        %vm597 = vcmp.eq.s32.totalorder %v481, %v593
        %vm598 = vcmp.eq.s32.totalorder %v482, %v593
        %vm599 = vcmp.eq.s32.totalorder %v483, %v593
        %vm600 = vcmp.eq.s32.totalorder %v484, %v593
        %vm601 = vcmp.eq.s32.totalorder %v485, %v593
        %vm602 = vcmp.eq.s32.totalorder %v486, %v593
        %vm603 = vcmp.eq.s32.totalorder %v487, %v593
        %vm604 = vcmp.eq.s32.totalorder %v488, %v593
        %vm605 = vcmp.eq.s32.totalorder %v489, %v593
        %vm606 = vcmp.eq.s32.totalorder %v490, %v593
        %vm607 = vcmp.eq.s32.totalorder %v491, %v593
        %vm608 = vcmp.eq.s32.totalorder %v492, %v593
        %vm609 = vcmp.eq.s32.totalorder %v493, %v593
        %v610 = vlaneseq
        %v611 = vshrl.u32 %v610, 7
        %v612 = vsub.s32 2, %v611
        %v613 = vrot.slane %v476, %v612
        %v614 = vsel %vm594, %v613, 0.0
        %v615 = vsel %vm595, %v613, 0.0
        %v616 = vsel %vm596, %v613, 0.0
        %v617 = vsel %vm597, %v613, 0.0
        %v618 = vsel %vm598, %v613, 0.0
        %v619 = vsel %vm599, %v613, 0.0
        %v620 = vsel %vm600, %v613, 0.0
        %v621 = vsel %vm601, %v613, 0.0
        %v622 = vsel %vm602, %v613, 0.0
        %v623 = vsel %vm603, %v613, 0.0
        %v624 = vsel %vm604, %v613, 0.0
        %v625 = vsel %vm605, %v613, 0.0
        %v626 = vsel %vm606, %v613, 0.0
        %v627 = vsel %vm607, %v613, 0.0
        %v628 = vsel %vm608, %v613, 0.0
        %v629 = vsel %vm609, %v613, 0.0
        %v630 = vadd.f32 %v574, %v614
        %v631 = vadd.f32 %v575, %v615
        %v632 = vadd.f32 %v576, %v616
        %v633 = vadd.f32 %v577, %v617
        %v634 = vadd.f32 %v578, %v618
        %v635 = vadd.f32 %v579, %v619
        %v636 = vadd.f32 %v580, %v620
        %v637 = vadd.f32 %v581, %v621
        %v638 = vadd.f32 %v582, %v622
        %v639 = vadd.f32 %v583, %v623
        %v640 = vadd.f32 %v584, %v624
        %v641 = vadd.f32 %v585, %v625
        %v642 = vadd.f32 %v586, %v626
        %v643 = vadd.f32 %v587, %v627
        %v644 = vadd.f32 %v588, %v628
        %v645 = vadd.f32 %v589, %v629
        %v646 = vld [vmem:[%s408] sm:$0xff]
        %v647 = vld [vmem:[%s408 + $0x8] sm:$0xff]
        %v648 = vld [vmem:[%s408 + $0x10] sm:$0xff]
        %v649 = vld [vmem:[%s408 + $0x18] sm:$0xff]
        %v650 = vld [vmem:[%s408 + $0x20] sm:$0xff]
        %v651 = vld [vmem:[%s408 + $0x28] sm:$0xff]
        %v652 = vld [vmem:[%s408 + $0x30] sm:$0xff]
        %v653 = vld [vmem:[%s408 + $0x38] sm:$0xff]
        %v654 = vld [vmem:[%s408 + $0x40] sm:$0xff]
        %v655 = vld [vmem:[%s408 + $0x48] sm:$0xff]
        %v656 = vld [vmem:[%s408 + $0x50] sm:$0xff]
        %v657 = vld [vmem:[%s408 + $0x58] sm:$0xff]
        %v658 = vld [vmem:[%s408 + $0x60] sm:$0xff]
        %v659 = vld [vmem:[%s408 + $0x68] sm:$0xff]
        %v660 = vld [vmem:[%s408 + $0x70] sm:$0xff]
        %v661 = vld [vmem:[%s408 + $0x78] sm:$0xff]
        %v662 = vld [vmem:[#allocation8] sm:$0xff]
        %v663 = vld [vmem:[#allocation8 + $0x8] sm:$0xff]
        %v664 = vld [vmem:[#allocation8 + $0x10] sm:$0xff]
        %v665 = vld [vmem:[#allocation8 + $0x18] sm:$0xff]
        %v666 = vld [vmem:[#allocation8 + $0x20] sm:$0xff]
        %v667 = vld [vmem:[#allocation8 + $0x28] sm:$0xff]
        %v668 = vld [vmem:[#allocation8 + $0x30] sm:$0xff]
        %v669 = vld [vmem:[#allocation8 + $0x38] sm:$0xff]
        %v670 = vld [vmem:[#allocation8 + $0x40] sm:$0xff]
        %v671 = vld [vmem:[#allocation8 + $0x48] sm:$0xff]
        %v672 = vld [vmem:[#allocation8 + $0x50] sm:$0xff]
        %v673 = vld [vmem:[#allocation8 + $0x58] sm:$0xff]
        %v674 = vld [vmem:[#allocation8 + $0x60] sm:$0xff]
        %v675 = vld [vmem:[#allocation8 + $0x68] sm:$0xff]
        %v676 = vld [vmem:[#allocation8 + $0x70] sm:$0xff]
        %v677 = vld [vmem:[#allocation8 + $0x78] sm:$0xff]
        %v678 = vld [vmem:[%s474] sm:$0xff]
        %v679 = vld [vmem:[%s474 + $0x8] sm:$0xff]
        %v680 = vld [vmem:[%s474 + $0x10] sm:$0xff]
        %v681 = vld [vmem:[%s474 + $0x18] sm:$0xff]
        %v682 = vld [vmem:[%s474 + $0x20] sm:$0xff]
        %v683 = vld [vmem:[%s474 + $0x28] sm:$0xff]
        %v684 = vld [vmem:[%s474 + $0x30] sm:$0xff]
        %v685 = vld [vmem:[%s474 + $0x38] sm:$0xff]
        %v686 = vld [vmem:[%s474 + $0x40] sm:$0xff]
        %v687 = vld [vmem:[%s474 + $0x48] sm:$0xff]
        %v688 = vld [vmem:[%s474 + $0x50] sm:$0xff]
        %v689 = vld [vmem:[%s474 + $0x58] sm:$0xff]
        %v690 = vld [vmem:[%s474 + $0x60] sm:$0xff]
        %v691 = vld [vmem:[%s474 + $0x68] sm:$0xff]
        %v692 = vld [vmem:[%s474 + $0x70] sm:$0xff]
        %v693 = vld [vmem:[%s474 + $0x78] sm:$0xff]
        %694 = vmatprep.subr.mxu0 0.0
        %695 = vmatpush1.msra.mxu0 %v678
        %696 = vmatprep.subr.mxu0 0.0
        %697 = vmatpush1.msra.mxu0 %v679
        %698 = vmatprep.subr.mxu0 0.0
        %699 = vmatpush1.msra.mxu0 %v680
        %700 = vmatprep.subr.mxu0 0.0
        %701 = vmatpush1.msra.mxu0 %v681
        %702 = vmatprep.subr.mxu0 0.0
        %703 = vmatpush1.msra.mxu0 %v682
        %704 = vmatprep.subr.mxu0 0.0
        %705 = vmatpush1.msra.mxu0 %v683
        %706 = vmatprep.subr.mxu0 0.0
        %707 = vmatpush1.msra.mxu0 %v684
        %708 = vmatprep.subr.mxu0 0.0
        %709 = vmatpush1.msra.mxu0 %v685
        %710 = vmatprep.subr.mxu0 0.0
        %711 = vmatpush1.msra.mxu0 %v686
        %712 = vmatprep.subr.mxu0 0.0
        %713 = vmatpush1.msra.mxu0 %v687
        %714 = vmatprep.subr.mxu0 0.0
        %715 = vmatpush1.msra.mxu0 %v688
        %716 = vmatprep.subr.mxu0 0.0
        %717 = vmatpush1.msra.mxu0 %v689
        %718 = vmatprep.subr.mxu0 0.0
        %719 = vmatpush1.msra.mxu0 %v690
        %720 = vmatprep.subr.mxu0 0.0
        %721 = vmatpush1.msra.mxu0 %v691
        %722 = vmatprep.subr.mxu0 0.0
        %723 = vmatpush1.msra.mxu0 %v692
        %724 = vmatprep.subr.mxu0 0.0
        %725 = vmatpush1.msra.mxu0 %v693
        %726 = vmatprep.subr.mxu0 0.0
        %727 = vmatpush1.msra.mxu0 0.0
        %728 = vmatprep.subr.mxu0 0.0
        %729 = vmatpush1.msra.mxu0 0.0
        %730 = vmatprep.subr.mxu0 0.0
        %731 = vmatpush1.msra.mxu0 0.0
        %732 = vmatprep.subr.mxu0 0.0
        %733 = vmatpush1.msra.mxu0 0.0
        %734 = vmatprep.subr.mxu0 0.0
        %735 = vmatpush1.msra.mxu0 0.0
        %736 = vmatprep.subr.mxu0 0.0
        %737 = vmatpush1.msra.mxu0 0.0
        %738 = vmatprep.subr.mxu0 0.0
        %739 = vmatpush1.msra.mxu0 0.0
        %740 = vmatprep.subr.mxu0 0.0
        %741 = vmatpush1.msra.mxu0 0.0
        %742 = vmatprep.subr.mxu0 0.0
        %743 = vmatpush1.msra.mxu0 0.0
        %744 = vmatprep.subr.mxu0 0.0
        %745 = vmatpush1.msra.mxu0 0.0
        %746 = vmatprep.subr.mxu0 0.0
        %747 = vmatpush1.msra.mxu0 0.0
        %748 = vmatprep.subr.mxu0 0.0
        %749 = vmatpush1.msra.mxu0 0.0
        %750 = vmatprep.subr.mxu0 0.0
        %751 = vmatpush1.msra.mxu0 0.0
        %752 = vmatprep.subr.mxu0 0.0
        %753 = vmatpush1.msra.mxu0 0.0
        %754 = vmatprep.subr.mxu0 0.0
        %755 = vmatpush1.msra.mxu0 0.0
        %756 = vmatprep.subr.mxu0 0.0
        %757 = vmatpush1.msra.mxu0 0.0
        %758 = vmatprep.mubr.f32.mxu0 0.0
        %759 = vmatmul.mubr.f32.gmra.mrb[0].mxu0 %v662
        %v760 = vpop.f32.mrb[0].mxu0
        %v761 = vadd.f32 0.0, %v760
        %v762 = vpop.f32.mrb[0].mxu0
        %763 = vmatprep.mubr.f32.mxu0 0.0
        %764 = vmatmul.mubr.f32.gmra.mrb[0].mxu0 %v663
        %v765 = vpop.f32.mrb[0].mxu0
        %v766 = vadd.f32 0.0, %v765
        %v767 = vpop.f32.mrb[0].mxu0
        %768 = vmatprep.mubr.f32.mxu0 0.0
        %769 = vmatmul.mubr.f32.gmra.mrb[0].mxu0 %v664
        %v770 = vpop.f32.mrb[0].mxu0
        %v771 = vadd.f32 0.0, %v770
        %v772 = vpop.f32.mrb[0].mxu0
        %773 = vmatprep.mubr.f32.mxu0 0.0
        %774 = vmatmul.mubr.f32.gmra.mrb[0].mxu0 %v665
        %v775 = vpop.f32.mrb[0].mxu0
        %v776 = vadd.f32 0.0, %v775
        %v777 = vpop.f32.mrb[0].mxu0
        %778 = vmatprep.mubr.f32.mxu0 0.0
        %779 = vmatmul.mubr.f32.gmra.mrb[0].mxu0 %v666
        %v780 = vpop.f32.mrb[0].mxu0
        %v781 = vadd.f32 0.0, %v780
        %v782 = vpop.f32.mrb[0].mxu0
        %783 = vmatprep.mubr.f32.mxu0 0.0
        %784 = vmatmul.mubr.f32.gmra.mrb[0].mxu0 %v667
        %v785 = vpop.f32.mrb[0].mxu0
        %v786 = vadd.f32 0.0, %v785
        %v787 = vpop.f32.mrb[0].mxu0
        %788 = vmatprep.mubr.f32.mxu0 0.0
        %789 = vmatmul.mubr.f32.gmra.mrb[0].mxu0 %v668
        %v790 = vpop.f32.mrb[0].mxu0
        %v791 = vadd.f32 0.0, %v790
        %v792 = vpop.f32.mrb[0].mxu0
        %793 = vmatprep.mubr.f32.mxu0 0.0
        %794 = vmatmul.mubr.f32.gmra.mrb[0].mxu0 %v669
        %v795 = vpop.f32.mrb[0].mxu0
        %v796 = vadd.f32 0.0, %v795
        %v797 = vpop.f32.mrb[0].mxu0
        %798 = vmatprep.mubr.f32.mxu0 0.0
        %799 = vmatmul.mubr.f32.gmra.mrb[0].mxu0 %v670
        %v800 = vpop.f32.mrb[0].mxu0
        %v801 = vadd.f32 0.0, %v800
        %v802 = vpop.f32.mrb[0].mxu0
        %803 = vmatprep.mubr.f32.mxu0 0.0
        %804 = vmatmul.mubr.f32.gmra.mrb[0].mxu0 %v671
        %v805 = vpop.f32.mrb[0].mxu0
        %v806 = vadd.f32 0.0, %v805
        %v807 = vpop.f32.mrb[0].mxu0
        %808 = vmatprep.mubr.f32.mxu0 0.0
        %809 = vmatmul.mubr.f32.gmra.mrb[0].mxu0 %v672
        %v810 = vpop.f32.mrb[0].mxu0
        %v811 = vadd.f32 0.0, %v810
        %v812 = vpop.f32.mrb[0].mxu0
        %813 = vmatprep.mubr.f32.mxu0 0.0
        %814 = vmatmul.mubr.f32.gmra.mrb[0].mxu0 %v673
        %v815 = vpop.f32.mrb[0].mxu0
        %v816 = vadd.f32 0.0, %v815
        %v817 = vpop.f32.mrb[0].mxu0
        %818 = vmatprep.mubr.f32.mxu0 0.0
        %819 = vmatmul.mubr.f32.gmra.mrb[0].mxu0 %v674
        %v820 = vpop.f32.mrb[0].mxu0
        %v821 = vadd.f32 0.0, %v820
        %v822 = vpop.f32.mrb[0].mxu0
        %823 = vmatprep.mubr.f32.mxu0 0.0
        %824 = vmatmul.mubr.f32.gmra.mrb[0].mxu0 %v675
        %v825 = vpop.f32.mrb[0].mxu0
        %v826 = vadd.f32 0.0, %v825
        %v827 = vpop.f32.mrb[0].mxu0
        %828 = vmatprep.mubr.f32.mxu0 0.0
        %829 = vmatmul.mubr.f32.gmra.mrb[0].mxu0 %v676
        %v830 = vpop.f32.mrb[0].mxu0
        %v831 = vadd.f32 0.0, %v830
        %v832 = vpop.f32.mrb[0].mxu0
        %833 = vmatprep.mubr.f32.mxu0 0.0
        %834 = vmatmul.mubr.f32.gmra.mrb[0].mxu0 %v677
        %v835 = vpop.f32.mrb[0].mxu0
        %v836 = vadd.f32 0.0, %v835
        %v837 = vpop.f32.mrb[0].mxu0
        %838 = vdwg.mxu0
        %839 = vmatprep.subr.mxu0 0.0
        %840 = vmatpush1.msra.mxu0 %v630
        %841 = vmatprep.subr.mxu0 0.0
        %842 = vmatpush1.msra.mxu0 %v631
        %843 = vmatprep.subr.mxu0 0.0
        %844 = vmatpush1.msra.mxu0 %v632
        %845 = vmatprep.subr.mxu0 0.0
        %846 = vmatpush1.msra.mxu0 %v633
        %847 = vmatprep.subr.mxu0 0.0
        %848 = vmatpush1.msra.mxu0 %v634
        %849 = vmatprep.subr.mxu0 0.0
        %850 = vmatpush1.msra.mxu0 %v635
        %851 = vmatprep.subr.mxu0 0.0
        %852 = vmatpush1.msra.mxu0 %v636
        %853 = vmatprep.subr.mxu0 0.0
        %854 = vmatpush1.msra.mxu0 %v637
        %855 = vmatprep.subr.mxu0 0.0
        %856 = vmatpush1.msra.mxu0 %v638
        %857 = vmatprep.subr.mxu0 0.0
        %858 = vmatpush1.msra.mxu0 %v639
        %859 = vmatprep.subr.mxu0 0.0
        %860 = vmatpush1.msra.mxu0 %v640
        %861 = vmatprep.subr.mxu0 0.0
        %862 = vmatpush1.msra.mxu0 %v641
        %863 = vmatprep.subr.mxu0 0.0
        %864 = vmatpush1.msra.mxu0 %v642
        %865 = vmatprep.subr.mxu0 0.0
        %866 = vmatpush1.msra.mxu0 %v643
        %867 = vmatprep.subr.mxu0 0.0
        %868 = vmatpush1.msra.mxu0 %v644
        %869 = vmatprep.subr.mxu0 0.0
        %870 = vmatpush1.msra.mxu0 %v645
        %871 = vmatprep.subr.mxu0 0.0
        %872 = vmatpush1.msra.mxu0 0.0
        %873 = vmatprep.subr.mxu0 0.0
        %874 = vmatpush1.msra.mxu0 0.0
        %875 = vmatprep.subr.mxu0 0.0
        %876 = vmatpush1.msra.mxu0 0.0
        %877 = vmatprep.subr.mxu0 0.0
        %878 = vmatpush1.msra.mxu0 0.0
        %879 = vmatprep.subr.mxu0 0.0
        %880 = vmatpush1.msra.mxu0 0.0
        %881 = vmatprep.subr.mxu0 0.0
        %882 = vmatpush1.msra.mxu0 0.0
        %883 = vmatprep.subr.mxu0 0.0
        %884 = vmatpush1.msra.mxu0 0.0
        %885 = vmatprep.subr.mxu0 0.0
        %886 = vmatpush1.msra.mxu0 0.0
        %887 = vmatprep.subr.mxu0 0.0
        %888 = vmatpush1.msra.mxu0 0.0
        %889 = vmatprep.subr.mxu0 0.0
        %890 = vmatpush1.msra.mxu0 0.0
        %891 = vmatprep.subr.mxu0 0.0
        %892 = vmatpush1.msra.mxu0 0.0
        %893 = vmatprep.subr.mxu0 0.0
        %894 = vmatpush1.msra.mxu0 0.0
        %895 = vmatprep.subr.mxu0 0.0
        %896 = vmatpush1.msra.mxu0 0.0
        %897 = vmatprep.subr.mxu0 0.0
        %898 = vmatpush1.msra.mxu0 0.0
        %899 = vmatprep.subr.mxu0 0.0
        %900 = vmatpush1.msra.mxu0 0.0
        %901 = vmatprep.subr.mxu0 0.0
        %902 = vmatpush1.msra.mxu0 0.0
        %903 = vmatprep.mubr.f32.mxu0 0.0
        %904 = vmatmul.mubr.f32.gmra.mrb[0].mxu0 %v646
        %v905 = vpop.f32.mrb[0].mxu0
        %v906 = vadd.f32 %v761, %v905
        %v907 = vpop.f32.mrb[0].mxu0
        %908 = vmatprep.mubr.f32.mxu0 0.0
        %909 = vmatmul.mubr.f32.gmra.mrb[0].mxu0 %v647
        %v910 = vpop.f32.mrb[0].mxu0
        %v911 = vadd.f32 %v766, %v910
        %v912 = vpop.f32.mrb[0].mxu0
        %913 = vmatprep.mubr.f32.mxu0 0.0
        %914 = vmatmul.mubr.f32.gmra.mrb[0].mxu0 %v648
        %v915 = vpop.f32.mrb[0].mxu0
        %v916 = vadd.f32 %v771, %v915
        %v917 = vpop.f32.mrb[0].mxu0
        %918 = vmatprep.mubr.f32.mxu0 0.0
        %919 = vmatmul.mubr.f32.gmra.mrb[0].mxu0 %v649
        %v920 = vpop.f32.mrb[0].mxu0
        %v921 = vadd.f32 %v776, %v920
        %v922 = vpop.f32.mrb[0].mxu0
        %923 = vmatprep.mubr.f32.mxu0 0.0
        %924 = vmatmul.mubr.f32.gmra.mrb[0].mxu0 %v650
        %v925 = vpop.f32.mrb[0].mxu0
        %v926 = vadd.f32 %v781, %v925
        %v927 = vpop.f32.mrb[0].mxu0
        %928 = vmatprep.mubr.f32.mxu0 0.0
        %929 = vmatmul.mubr.f32.gmra.mrb[0].mxu0 %v651
        %v930 = vpop.f32.mrb[0].mxu0
        %v931 = vadd.f32 %v786, %v930
        %v932 = vpop.f32.mrb[0].mxu0
        %933 = vmatprep.mubr.f32.mxu0 0.0
        %934 = vmatmul.mubr.f32.gmra.mrb[0].mxu0 %v652
        %v935 = vpop.f32.mrb[0].mxu0
        %v936 = vadd.f32 %v791, %v935
        %v937 = vpop.f32.mrb[0].mxu0
        %938 = vmatprep.mubr.f32.mxu0 0.0
        %939 = vmatmul.mubr.f32.gmra.mrb[0].mxu0 %v653
        %v940 = vpop.f32.mrb[0].mxu0
        %v941 = vadd.f32 %v796, %v940
        %v942 = vpop.f32.mrb[0].mxu0
        %943 = vmatprep.mubr.f32.mxu0 0.0
        %944 = vmatmul.mubr.f32.gmra.mrb[0].mxu0 %v654
        %v945 = vpop.f32.mrb[0].mxu0
        %v946 = vadd.f32 %v801, %v945
        %v947 = vpop.f32.mrb[0].mxu0
        %948 = vmatprep.mubr.f32.mxu0 0.0
        %949 = vmatmul.mubr.f32.gmra.mrb[0].mxu0 %v655
        %v950 = vpop.f32.mrb[0].mxu0
        %v951 = vadd.f32 %v806, %v950
        %v952 = vpop.f32.mrb[0].mxu0
        %953 = vmatprep.mubr.f32.mxu0 0.0
        %954 = vmatmul.mubr.f32.gmra.mrb[0].mxu0 %v656
        %v955 = vpop.f32.mrb[0].mxu0
        %v956 = vadd.f32 %v811, %v955
        %v957 = vpop.f32.mrb[0].mxu0
        %958 = vmatprep.mubr.f32.mxu0 0.0
        %959 = vmatmul.mubr.f32.gmra.mrb[0].mxu0 %v657
        %v960 = vpop.f32.mrb[0].mxu0
        %v961 = vadd.f32 %v816, %v960
        %v962 = vpop.f32.mrb[0].mxu0
        %963 = vmatprep.mubr.f32.mxu0 0.0
        %964 = vmatmul.mubr.f32.gmra.mrb[0].mxu0 %v658
        %v965 = vpop.f32.mrb[0].mxu0
        %v966 = vadd.f32 %v821, %v965
        %v967 = vpop.f32.mrb[0].mxu0
        %968 = vmatprep.mubr.f32.mxu0 0.0
        %969 = vmatmul.mubr.f32.gmra.mrb[0].mxu0 %v659
        %v970 = vpop.f32.mrb[0].mxu0
        %v971 = vadd.f32 %v826, %v970
        %v972 = vpop.f32.mrb[0].mxu0
        %973 = vmatprep.mubr.f32.mxu0 0.0
        %974 = vmatmul.mubr.f32.gmra.mrb[0].mxu0 %v660
        %v975 = vpop.f32.mrb[0].mxu0
        %v976 = vadd.f32 %v831, %v975
        %v977 = vpop.f32.mrb[0].mxu0
        %978 = vmatprep.mubr.f32.mxu0 0.0
        %979 = vmatmul.mubr.f32.gmra.mrb[0].mxu0 %v661
        %v980 = vpop.f32.mrb[0].mxu0
        %v981 = vadd.f32 %v836, %v980
        %v982 = vpop.f32.mrb[0].mxu0
        %983 = vdwg.mxu0
        %v984 = vld [vmem:[%s5] sm:$0xff]
        %v985 = vld [vmem:[%s5 + $0x8] sm:$0xff]
        %v986 = vld [vmem:[%s5 + $0x10] sm:$0xff]
        %v987 = vld [vmem:[%s5 + $0x18] sm:$0xff]
        %v988 = vld [vmem:[%s5 + $0x20] sm:$0xff]
        %v989 = vld [vmem:[%s5 + $0x28] sm:$0xff]
        %v990 = vld [vmem:[%s5 + $0x30] sm:$0xff]
        %v991 = vld [vmem:[%s5 + $0x38] sm:$0xff]
        %v992 = vld [vmem:[%s5 + $0x40] sm:$0xff]
        %v993 = vld [vmem:[%s5 + $0x48] sm:$0xff]
        %v994 = vld [vmem:[%s5 + $0x50] sm:$0xff]
        %v995 = vld [vmem:[%s5 + $0x58] sm:$0xff]
        %v996 = vld [vmem:[%s5 + $0x60] sm:$0xff]
        %v997 = vld [vmem:[%s5 + $0x68] sm:$0xff]
        %v998 = vld [vmem:[%s5 + $0x70] sm:$0xff]
        %v999 = vld [vmem:[%s5 + $0x78] sm:$0xff]
        %1001 = vset.pattern.permute.xlu0 0
        %1002 = vperm.xlu0 %1001, %v984
        %v1003 = vpop.permute.xlu0 %1002
        %1006 = vset.pattern.permute.xlu0 0
        %1007 = vperm.xlu0 %1006, %v985
        %v1008 = vpop.permute.xlu0 %1007
        %1011 = vset.pattern.permute.xlu0 0
        %1012 = vperm.xlu0 %1011, %v986
        %v1013 = vpop.permute.xlu0 %1012
        %1016 = vset.pattern.permute.xlu0 0
        %1017 = vperm.xlu0 %1016, %v987
        %v1018 = vpop.permute.xlu0 %1017
        %1021 = vset.pattern.permute.xlu0 0
        %1022 = vperm.xlu0 %1021, %v988
        %v1023 = vpop.permute.xlu0 %1022
        %1026 = vset.pattern.permute.xlu0 0
        %1027 = vperm.xlu0 %1026, %v989
        %v1028 = vpop.permute.xlu0 %1027
        %1031 = vset.pattern.permute.xlu0 0
        %1032 = vperm.xlu0 %1031, %v990
        %v1033 = vpop.permute.xlu0 %1032
        %1036 = vset.pattern.permute.xlu0 0
        %1037 = vperm.xlu0 %1036, %v991
        %v1038 = vpop.permute.xlu0 %1037
        %1041 = vset.pattern.permute.xlu0 0
        %1042 = vperm.xlu0 %1041, %v992
        %v1043 = vpop.permute.xlu0 %1042
        %1046 = vset.pattern.permute.xlu0 0
        %1047 = vperm.xlu0 %1046, %v993
        %v1048 = vpop.permute.xlu0 %1047
        %1051 = vset.pattern.permute.xlu0 0
        %1052 = vperm.xlu0 %1051, %v994
        %v1053 = vpop.permute.xlu0 %1052
        %1056 = vset.pattern.permute.xlu0 0
        %1057 = vperm.xlu0 %1056, %v995
        %v1058 = vpop.permute.xlu0 %1057
        %1061 = vset.pattern.permute.xlu0 0
        %1062 = vperm.xlu0 %1061, %v996
        %v1063 = vpop.permute.xlu0 %1062
        %1066 = vset.pattern.permute.xlu0 0
        %1067 = vperm.xlu0 %1066, %v997
        %v1068 = vpop.permute.xlu0 %1067
        %1071 = vset.pattern.permute.xlu0 0
        %1072 = vperm.xlu0 %1071, %v998
        %v1073 = vpop.permute.xlu0 %1072
        %1076 = vset.pattern.permute.xlu0 0
        %1077 = vperm.xlu0 %1076, %v999
        %v1078 = vpop.permute.xlu0 %1077
        %v1080 = vadd.f32 %v906, %v1003
        %v1081 = vadd.f32 %v911, %v1008
        %v1082 = vadd.f32 %v916, %v1013
        %v1083 = vadd.f32 %v921, %v1018
        %v1084 = vadd.f32 %v926, %v1023
        %v1085 = vadd.f32 %v931, %v1028
        %v1086 = vadd.f32 %v936, %v1033
        %v1087 = vadd.f32 %v941, %v1038
        %v1088 = vadd.f32 %v946, %v1043
        %v1089 = vadd.f32 %v951, %v1048
        %v1090 = vadd.f32 %v956, %v1053
        %v1091 = vadd.f32 %v961, %v1058
        %v1092 = vadd.f32 %v966, %v1063
        %v1093 = vadd.f32 %v971, %v1068
        %v1094 = vadd.f32 %v976, %v1073
        %v1095 = vadd.f32 %v981, %v1078
        %v1096 = vmax.f32 %v1080, 0.0
        %v1097 = vmax.f32 %v1081, 0.0
        %v1098 = vmax.f32 %v1082, 0.0
        %v1099 = vmax.f32 %v1083, 0.0
        %v1100 = vmax.f32 %v1084, 0.0
        %v1101 = vmax.f32 %v1085, 0.0
        %v1102 = vmax.f32 %v1086, 0.0
        %v1103 = vmax.f32 %v1087, 0.0
        %v1104 = vmax.f32 %v1088, 0.0
        %v1105 = vmax.f32 %v1089, 0.0
        %v1106 = vmax.f32 %v1090, 0.0
        %v1107 = vmax.f32 %v1091, 0.0
        %v1108 = vmax.f32 %v1092, 0.0
        %v1109 = vmax.f32 %v1093, 0.0
        %v1110 = vmax.f32 %v1094, 0.0
        %v1111 = vmax.f32 %v1095, 0.0
        %v1112 = vld [vmem:[#allocation10] sm:$0xff]
        %v1113 = vld [vmem:[#allocation10 + $0x8] sm:$0xff]
        %v1114 = vld [vmem:[#allocation10 + $0x10] sm:$0xff]
        %v1115 = vld [vmem:[#allocation10 + $0x18] sm:$0xff]
        %v1116 = vld [vmem:[#allocation10 + $0x20] sm:$0xff]
        %v1117 = vld [vmem:[#allocation10 + $0x28] sm:$0xff]
        %v1118 = vld [vmem:[#allocation10 + $0x30] sm:$0xff]
        %v1119 = vld [vmem:[#allocation10 + $0x38] sm:$0xff]
        %v1120 = vld [vmem:[#allocation10 + $0x40] sm:$0xff]
        %v1121 = vld [vmem:[#allocation10 + $0x48] sm:$0xff]
        %v1122 = vld [vmem:[#allocation10 + $0x50] sm:$0xff]
        %v1123 = vld [vmem:[#allocation10 + $0x58] sm:$0xff]
        %v1124 = vld [vmem:[#allocation10 + $0x60] sm:$0xff]
        %v1125 = vld [vmem:[#allocation10 + $0x68] sm:$0xff]
        %v1126 = vld [vmem:[#allocation10 + $0x70] sm:$0xff]
        %v1127 = vld [vmem:[#allocation10 + $0x78] sm:$0xff]
        %v1128 = vld [vmem:[%s7] sm:$0xff]
        %v1129 = vld [vmem:[%s7 + $0x8] sm:$0xff]
        %v1130 = vld [vmem:[%s7 + $0x10] sm:$0xff]
        %v1131 = vld [vmem:[%s7 + $0x18] sm:$0xff]
        %v1132 = vld [vmem:[%s7 + $0x20] sm:$0xff]
        %v1133 = vld [vmem:[%s7 + $0x28] sm:$0xff]
        %v1134 = vld [vmem:[%s7 + $0x30] sm:$0xff]
        %v1135 = vld [vmem:[%s7 + $0x38] sm:$0xff]
        %v1136 = vld [vmem:[%s7 + $0x40] sm:$0xff]
        %v1137 = vld [vmem:[%s7 + $0x48] sm:$0xff]
        %v1138 = vld [vmem:[%s7 + $0x50] sm:$0xff]
        %v1139 = vld [vmem:[%s7 + $0x58] sm:$0xff]
        %v1140 = vld [vmem:[%s7 + $0x60] sm:$0xff]
        %v1141 = vld [vmem:[%s7 + $0x68] sm:$0xff]
        %v1142 = vld [vmem:[%s7 + $0x70] sm:$0xff]
        %v1143 = vld [vmem:[%s7 + $0x78] sm:$0xff]
        %1145 = vset.pattern.permute.xlu0 0
        %1146 = vperm.xlu0 %1145, %v1128
        %v1147 = vpop.permute.xlu0 %1146
        %1150 = vset.pattern.permute.xlu0 0
        %1151 = vperm.xlu0 %1150, %v1129
        %v1152 = vpop.permute.xlu0 %1151
        %1155 = vset.pattern.permute.xlu0 0
        %1156 = vperm.xlu0 %1155, %v1130
        %v1157 = vpop.permute.xlu0 %1156
        %1160 = vset.pattern.permute.xlu0 0
        %1161 = vperm.xlu0 %1160, %v1131
        %v1162 = vpop.permute.xlu0 %1161
        %1165 = vset.pattern.permute.xlu0 0
        %1166 = vperm.xlu0 %1165, %v1132
        %v1167 = vpop.permute.xlu0 %1166
        %1170 = vset.pattern.permute.xlu0 0
        %1171 = vperm.xlu0 %1170, %v1133
        %v1172 = vpop.permute.xlu0 %1171
        %1175 = vset.pattern.permute.xlu0 0
        %1176 = vperm.xlu0 %1175, %v1134
        %v1177 = vpop.permute.xlu0 %1176
        %1180 = vset.pattern.permute.xlu0 0
        %1181 = vperm.xlu0 %1180, %v1135
        %v1182 = vpop.permute.xlu0 %1181
        %1185 = vset.pattern.permute.xlu0 0
        %1186 = vperm.xlu0 %1185, %v1136
        %v1187 = vpop.permute.xlu0 %1186
        %1190 = vset.pattern.permute.xlu0 0
        %1191 = vperm.xlu0 %1190, %v1137
        %v1192 = vpop.permute.xlu0 %1191
        %1195 = vset.pattern.permute.xlu0 0
        %1196 = vperm.xlu0 %1195, %v1138
        %v1197 = vpop.permute.xlu0 %1196
        %1200 = vset.pattern.permute.xlu0 0
        %1201 = vperm.xlu0 %1200, %v1139
        %v1202 = vpop.permute.xlu0 %1201
        %1205 = vset.pattern.permute.xlu0 0
        %1206 = vperm.xlu0 %1205, %v1140
        %v1207 = vpop.permute.xlu0 %1206
        %1210 = vset.pattern.permute.xlu0 0
        %1211 = vperm.xlu0 %1210, %v1141
        %v1212 = vpop.permute.xlu0 %1211
        %1215 = vset.pattern.permute.xlu0 0
        %1216 = vperm.xlu0 %1215, %v1142
        %v1217 = vpop.permute.xlu0 %1216
        %1220 = vset.pattern.permute.xlu0 0
        %1221 = vperm.xlu0 %1220, %v1143
        %v1222 = vpop.permute.xlu0 %1221
        %1224 = vmatprep.subr.mxu0 0.0
        %1225 = vmatpush1.msra.mxu0 %v1096
        %1226 = vmatprep.subr.mxu0 0.0
        %1227 = vmatpush1.msra.mxu0 %v1097
        %1228 = vmatprep.subr.mxu0 0.0
        %1229 = vmatpush1.msra.mxu0 %v1098
        %1230 = vmatprep.subr.mxu0 0.0
        %1231 = vmatpush1.msra.mxu0 %v1099
        %1232 = vmatprep.subr.mxu0 0.0
        %1233 = vmatpush1.msra.mxu0 %v1100
        %1234 = vmatprep.subr.mxu0 0.0
        %1235 = vmatpush1.msra.mxu0 %v1101
        %1236 = vmatprep.subr.mxu0 0.0
        %1237 = vmatpush1.msra.mxu0 %v1102
        %1238 = vmatprep.subr.mxu0 0.0
        %1239 = vmatpush1.msra.mxu0 %v1103
        %1240 = vmatprep.subr.mxu0 0.0
        %1241 = vmatpush1.msra.mxu0 %v1104
        %1242 = vmatprep.subr.mxu0 0.0
        %1243 = vmatpush1.msra.mxu0 %v1105
        %1244 = vmatprep.subr.mxu0 0.0
        %1245 = vmatpush1.msra.mxu0 %v1106
        %1246 = vmatprep.subr.mxu0 0.0
        %1247 = vmatpush1.msra.mxu0 %v1107
        %1248 = vmatprep.subr.mxu0 0.0
        %1249 = vmatpush1.msra.mxu0 %v1108
        %1250 = vmatprep.subr.mxu0 0.0
        %1251 = vmatpush1.msra.mxu0 %v1109
        %1252 = vmatprep.subr.mxu0 0.0
        %1253 = vmatpush1.msra.mxu0 %v1110
        %1254 = vmatprep.subr.mxu0 0.0
        %1255 = vmatpush1.msra.mxu0 %v1111
        %1256 = vmatprep.subr.mxu0 0.0
        %1257 = vmatpush1.msra.mxu0 0.0
        %1258 = vmatprep.subr.mxu0 0.0
        %1259 = vmatpush1.msra.mxu0 0.0
        %1260 = vmatprep.subr.mxu0 0.0
        %1261 = vmatpush1.msra.mxu0 0.0
        %1262 = vmatprep.subr.mxu0 0.0
        %1263 = vmatpush1.msra.mxu0 0.0
        %1264 = vmatprep.subr.mxu0 0.0
        %1265 = vmatpush1.msra.mxu0 0.0
        %1266 = vmatprep.subr.mxu0 0.0
        %1267 = vmatpush1.msra.mxu0 0.0
        %1268 = vmatprep.subr.mxu0 0.0
        %1269 = vmatpush1.msra.mxu0 0.0
        %1270 = vmatprep.subr.mxu0 0.0
        %1271 = vmatpush1.msra.mxu0 0.0
        %1272 = vmatprep.subr.mxu0 0.0
        %1273 = vmatpush1.msra.mxu0 0.0
        %1274 = vmatprep.subr.mxu0 0.0
        %1275 = vmatpush1.msra.mxu0 0.0
        %1276 = vmatprep.subr.mxu0 0.0
        %1277 = vmatpush1.msra.mxu0 0.0
        %1278 = vmatprep.subr.mxu0 0.0
        %1279 = vmatpush1.msra.mxu0 0.0
        %1280 = vmatprep.subr.mxu0 0.0
        %1281 = vmatpush1.msra.mxu0 0.0
        %1282 = vmatprep.subr.mxu0 0.0
        %1283 = vmatpush1.msra.mxu0 0.0
        %1284 = vmatprep.subr.mxu0 0.0
        %1285 = vmatpush1.msra.mxu0 0.0
        %1286 = vmatprep.subr.mxu0 0.0
        %1287 = vmatpush1.msra.mxu0 0.0
        %1288 = vmatprep.mubr.f32.mxu0 0.0
        %1289 = vmatmul.mubr.f32.gmra.mrb[0].mxu0 %v1112
        %v1290 = vpop.f32.mrb[0].mxu0
        %v1291 = vadd.f32 %v1147, %v1290
        %v1292 = vpop.f32.mrb[0].mxu0
        %1293 = vmatprep.mubr.f32.mxu0 0.0
        %1294 = vmatmul.mubr.f32.gmra.mrb[0].mxu0 %v1113
        %v1295 = vpop.f32.mrb[0].mxu0
        %v1296 = vadd.f32 %v1152, %v1295
        %v1297 = vpop.f32.mrb[0].mxu0
        %1298 = vmatprep.mubr.f32.mxu0 0.0
        %1299 = vmatmul.mubr.f32.gmra.mrb[0].mxu0 %v1114
        %v1300 = vpop.f32.mrb[0].mxu0
        %v1301 = vadd.f32 %v1157, %v1300
        %v1302 = vpop.f32.mrb[0].mxu0
        %1303 = vmatprep.mubr.f32.mxu0 0.0
        %1304 = vmatmul.mubr.f32.gmra.mrb[0].mxu0 %v1115
        %v1305 = vpop.f32.mrb[0].mxu0
        %v1306 = vadd.f32 %v1162, %v1305
        %v1307 = vpop.f32.mrb[0].mxu0
        %1308 = vmatprep.mubr.f32.mxu0 0.0
        %1309 = vmatmul.mubr.f32.gmra.mrb[0].mxu0 %v1116
        %v1310 = vpop.f32.mrb[0].mxu0
        %v1311 = vadd.f32 %v1167, %v1310
        %v1312 = vpop.f32.mrb[0].mxu0
        %1313 = vmatprep.mubr.f32.mxu0 0.0
        %1314 = vmatmul.mubr.f32.gmra.mrb[0].mxu0 %v1117
        %v1315 = vpop.f32.mrb[0].mxu0
        %v1316 = vadd.f32 %v1172, %v1315
        %v1317 = vpop.f32.mrb[0].mxu0
        %1318 = vmatprep.mubr.f32.mxu0 0.0
        %1319 = vmatmul.mubr.f32.gmra.mrb[0].mxu0 %v1118
        %v1320 = vpop.f32.mrb[0].mxu0
        %v1321 = vadd.f32 %v1177, %v1320
        %v1322 = vpop.f32.mrb[0].mxu0
        %1323 = vmatprep.mubr.f32.mxu0 0.0
        %1324 = vmatmul.mubr.f32.gmra.mrb[0].mxu0 %v1119
        %v1325 = vpop.f32.mrb[0].mxu0
        %v1326 = vadd.f32 %v1182, %v1325
        %v1327 = vpop.f32.mrb[0].mxu0
        %1328 = vmatprep.mubr.f32.mxu0 0.0
        %1329 = vmatmul.mubr.f32.gmra.mrb[0].mxu0 %v1120
        %v1330 = vpop.f32.mrb[0].mxu0
        %v1331 = vadd.f32 %v1187, %v1330
        %v1332 = vpop.f32.mrb[0].mxu0
        %1333 = vmatprep.mubr.f32.mxu0 0.0
        %1334 = vmatmul.mubr.f32.gmra.mrb[0].mxu0 %v1121
        %v1335 = vpop.f32.mrb[0].mxu0
        %v1336 = vadd.f32 %v1192, %v1335
        %v1337 = vpop.f32.mrb[0].mxu0
        %1338 = vmatprep.mubr.f32.mxu0 0.0
        %1339 = vmatmul.mubr.f32.gmra.mrb[0].mxu0 %v1122
        %v1340 = vpop.f32.mrb[0].mxu0
        %v1341 = vadd.f32 %v1197, %v1340
        %v1342 = vpop.f32.mrb[0].mxu0
        %1343 = vmatprep.mubr.f32.mxu0 0.0
        %1344 = vmatmul.mubr.f32.gmra.mrb[0].mxu0 %v1123
        %v1345 = vpop.f32.mrb[0].mxu0
        %v1346 = vadd.f32 %v1202, %v1345
        %v1347 = vpop.f32.mrb[0].mxu0
        %1348 = vmatprep.mubr.f32.mxu0 0.0
        %1349 = vmatmul.mubr.f32.gmra.mrb[0].mxu0 %v1124
        %v1350 = vpop.f32.mrb[0].mxu0
        %v1351 = vadd.f32 %v1207, %v1350
        %v1352 = vpop.f32.mrb[0].mxu0
        %1353 = vmatprep.mubr.f32.mxu0 0.0
        %1354 = vmatmul.mubr.f32.gmra.mrb[0].mxu0 %v1125
        %v1355 = vpop.f32.mrb[0].mxu0
        %v1356 = vadd.f32 %v1212, %v1355
        %v1357 = vpop.f32.mrb[0].mxu0
        %1358 = vmatprep.mubr.f32.mxu0 0.0
        %1359 = vmatmul.mubr.f32.gmra.mrb[0].mxu0 %v1126
        %v1360 = vpop.f32.mrb[0].mxu0
        %v1361 = vadd.f32 %v1217, %v1360
        %v1362 = vpop.f32.mrb[0].mxu0
        %1363 = vmatprep.mubr.f32.mxu0 0.0
        %1364 = vmatmul.mubr.f32.gmra.mrb[0].mxu0 %v1127
        %v1365 = vpop.f32.mrb[0].mxu0
        %v1366 = vadd.f32 %v1222, %v1365
        %v1367 = vpop.f32.mrb[0].mxu0
        %1368 = vdwg.mxu0
        %v1369 = vmax.f32 %v1291, 0.0
        %v1370 = vmax.f32 %v1296, 0.0
        %v1371 = vmax.f32 %v1301, 0.0
        %v1372 = vmax.f32 %v1306, 0.0
        %v1373 = vmax.f32 %v1311, 0.0
        %v1374 = vmax.f32 %v1316, 0.0
        %v1375 = vmax.f32 %v1321, 0.0
        %v1376 = vmax.f32 %v1326, 0.0
        %v1377 = vmax.f32 %v1331, 0.0
        %v1378 = vmax.f32 %v1336, 0.0
        %v1379 = vmax.f32 %v1341, 0.0
        %v1380 = vmax.f32 %v1346, 0.0
        %v1381 = vmax.f32 %v1351, 0.0
        %v1382 = vmax.f32 %v1356, 0.0
        %v1383 = vmax.f32 %v1361, 0.0
        %v1384 = vmax.f32 %v1366, 0.0
        %1385 = vst [vmem:[%s466] sm:$0xff] %v1369
        %1386 = vst [vmem:[%s466 + $0x8] sm:$0xff] %v1370
        %1387 = vst [vmem:[%s466 + $0x10] sm:$0xff] %v1371
        %1388 = vst [vmem:[%s466 + $0x18] sm:$0xff] %v1372
        %1389 = vst [vmem:[%s466 + $0x20] sm:$0xff] %v1373
        %1390 = vst [vmem:[%s466 + $0x28] sm:$0xff] %v1374
        %1391 = vst [vmem:[%s466 + $0x30] sm:$0xff] %v1375
        %1392 = vst [vmem:[%s466 + $0x38] sm:$0xff] %v1376
        %1393 = vst [vmem:[%s466 + $0x40] sm:$0xff] %v1377
        %1394 = vst [vmem:[%s466 + $0x48] sm:$0xff] %v1378
        %1395 = vst [vmem:[%s466 + $0x50] sm:$0xff] %v1379
        %1396 = vst [vmem:[%s466 + $0x58] sm:$0xff] %v1380
        %1397 = vst [vmem:[%s466 + $0x60] sm:$0xff] %v1381
        %1398 = vst [vmem:[%s466 + $0x68] sm:$0xff] %v1382
        %1399 = vst [vmem:[%s466 + $0x70] sm:$0xff] %v1383
        %1400 = vst [vmem:[%s466 + $0x78] sm:$0xff] %v1384
        %s1401 = sand.u32 %s245, 1
        %s1402 = scalar_lea.sflag [#allocation4], %s1401
        %s1403 = sand.u32 %s245, 1
        %s1404 = smul.addr %s1403, 128
        %s1405 = scalar_lea.vmem [#allocation11], %s1404
        // Predicated region
        $region73: #{tpu_custom_call.1} parent=51 // pred_check
          %p1406 = pneg %p255
        $region74: #{tpu_custom_call.1} parent=51 // pred_check_branch
          %1408 = sbr.rel (%p1406) target = $region76
        $region75: #{tpu_custom_call.1} parent=51 // pred_region
          %s1410 = ssub.s32 2048, 2048
          %1411 = vsyncadd %s1402, %s1410
          %s1412 = smul.addr %s33, 16
          %s1413 = sadd.s32 %s34, %s1412
          %s1414 = smul.addr %s1413, 128
          %s1415 = scalar_lea.hbm %s8, %s1414
          %s1416 = sshll.u32 %s1405, 4
          %s1417 = int_to_ptr.vmem [resolvable:$true] %s1416
          %1422 = dma.vmem_to_hbm [thread:$0]  %s1417, 2048, %s1415, %s1402, 128, 128, 8
        $region76: #{tpu_custom_call.1} parent=51 // pred_fallthru
          _
      $region52: #{tpu_custom_call.1} parent=5 // pred_fallthru
        _
      %p1423 = scmp.le.s32.totalorder 2, %s24
      // Predicated region
      $region77: #{tpu_custom_call.1} parent=5 // pred_check
        %p1424 = pneg %p1423
      $region78: #{tpu_custom_call.1} parent=5 // pred_check_branch
        %1426 = sbr.rel (%p1424) target = $region80
      $region79: #{tpu_custom_call.1} parent=5 // pred_region
        %s1427 = ssub.s32 %s24, 2
        // Predicated region
        $region81: #{tpu_custom_call.1} parent=79 // pred_check
          %p1428 = pneg %p261
        $region82: #{tpu_custom_call.1} parent=79 // pred_check_branch
          %1430 = sbr.rel (%p1428) target = $region84
        $region83: #{tpu_custom_call.1} parent=79 // pred_region
          %s1431 = sand.u32 %s246, 1
          %s1432 = scalar_lea.sflag [#allocation4], %s1431
          %s1433 = sand.u32 %s246, 1
          %s1434 = smul.addr %s1433, 128
          %s1435 = scalar_lea.vmem [#allocation11], %s1434
          %1436 = dma.done %s1432, 2048
        $region84: #{tpu_custom_call.1} parent=79 // pred_fallthru
          _
      $region80: #{tpu_custom_call.1} parent=5 // pred_fallthru
        _
    $region6: #{tpu_custom_call.1} parent=1 // loop_footer
      %s28 = sadd.s32 1, %s24
    $region7: #{tpu_custom_call.1} parent=1 // loop_footer_branch
      %23 = sbr.rel target = $region3
    $region8: #{tpu_custom_call.1} parent=1 // loop_exit
      _
    %1437 = vsyncpa [#allocation3], 1
    %s1438 = scalar_lea.sflag [#allocation3], 1
    %1439 = vsyncpa %s1438, 1
    %1440 = vsyncpa [#allocation6], 1
    %s1441 = scalar_lea.sflag [#allocation6], 1
    %1442 = vsyncpa %s1441, 1
    %1443 = vsyncpa [#allocation9], 1
    %1444 = vsyncpa [#allocation4], 1
    %s1445 = scalar_lea.sflag [#allocation4], 1
    %1446 = vsyncpa %s1445, 1

</llo_original>
